<compile_context>
chip_gen: v7x
topology: tpu7x:2x2x1
jax: 0.10.0
libtpu: 0.0.40
codegen_flags: <defaults>
</compile_context>

<pallas_src>
import functools

import jax
import jax.numpy as jnp
from jax import lax
from jax.experimental import pallas as pl
from jax.experimental.pallas import tpu as pltpu


def _double_conv_kernel(lhs1_ref, w1_ref, p1_ref, a_ref, w2_ref, p2_ref,
                        o_ref, midp_ref, *, Nb, H, W, Cin, Cmid, Cout, eps):
  """Fused (Conv3x3 -> SiLU -> GroupNorm) x 2 for Nb batch elements.

  lhs1_ref : (Nb, H, 3*W*Cin)     prebuilt im2row LHS for conv1 (bf16)
  w1_ref   : (3*W*Cin, W*Cmid)    banded conv1 weight (bf16)
  p1_ref   : (3, W*Cmid)          rows = [bias, gamma, beta], tiled over w (f32)
  a_ref    : (W*Cmid, W*Cmid)     group-averaging matrix (f32)
  w2_ref   : (3, W*Cmid, W*Cout)  banded conv2 weight, one slab per row shift (bf16)
  p2_ref   : (3, W*Cout)          rows = [bias, gamma, beta] (f32)
  o_ref    : (Nb, H, W*Cout)      lane-dense output (f32)
  midp_ref : (Nb, H+2, W*Cmid)    VMEM scratch: H-padded mid activation (bf16)
  """
  WCm = W * Cmid

  def silu(y):
    return y * jax.nn.sigmoid(y)

  def group_norm(y2d, gamma_l, beta_l):
    # Per-sample GroupNorm on y2d (Nb*H, W*C).  Reduce over H first (cheap XLU
    # sublane reduce), then one tiny matmul broadcasts per-group mean / E[x^2]
    # back to every lane; one fused scale+shift applies GN + affine.
    y3d = y2d.reshape(Nb, H, y2d.shape[-1])
    rowsum = jnp.sum(y3d, axis=1)                      # (Nb, W*C)
    rowsum2 = jnp.sum(y3d * y3d, axis=1)               # (Nb, W*C)
    stats = jnp.concatenate([rowsum, rowsum2], axis=0)  # (2*Nb, W*C)
    g = jnp.dot(stats, a_ref[...], preferred_element_type=jnp.float32)
    mu, ex2 = g[:Nb], g[Nb:]
    var = jnp.maximum(ex2 - mu * mu, 0.0)              # guard single-pass cancellation
    rstd = lax.rsqrt(var + eps)
    scale = rstd * gamma_l                              # (Nb, W*C)
    shift = beta_l - mu * scale
    return y3d * scale[:, None, :] + shift[:, None, :]  # (Nb, H, W*C)

  # ---- Block 1: Conv(Cin->Cmid) -> SiLU -> GroupNorm ------------------------
  lhs1 = lhs1_ref[...].reshape(Nb * H, 3 * W * Cin)     # free relayout (H % 8 == 0)
  y1 = jnp.dot(lhs1, w1_ref[...], preferred_element_type=jnp.float32)
  y1 = silu(y1 + p1_ref[0:1, :])
  y1n = group_norm(y1, p1_ref[1:2, :], p1_ref[2:3, :])  # (Nb, H, W*Cmid) f32

  # ---- Re-pad the mid activation in VMEM (lane 0, width W*Cmid: unmasked) ---
  y1_bf = y1n.astype(midp_ref.dtype)
  zrow = jnp.zeros((Nb, 1, WCm), dtype=midp_ref.dtype)
  midp_ref[:, 0:1, :] = zrow                            # top halo row
  midp_ref[:, H + 1:H + 2, :] = zrow                    # bottom halo row
  midp_ref[:, 1:H + 1, :] = y1_bf                       # interior

  # ---- Block 2: Conv(Cmid->Cout) -> SiLU -> GroupNorm -----------------------
  # Three accumulating dots, one per row shift (no lane-axis concatenate).
  y2 = jnp.dot(midp_ref[:, 0:H, :].reshape(Nb * H, WCm), w2_ref[0],
               preferred_element_type=jnp.float32)
  y2 = y2 + jnp.dot(y1_bf.reshape(Nb * H, WCm), w2_ref[1],
                    preferred_element_type=jnp.float32)
  y2 = y2 + jnp.dot(midp_ref[:, 2:H + 2, :].reshape(Nb * H, WCm), w2_ref[2],
                    preferred_element_type=jnp.float32)
  y2 = silu(y2 + p2_ref[0:1, :])
  y2n = group_norm(y2, p2_ref[1:2, :], p2_ref[2:3, :])  # (Nb, H, W*Cout)
  o_ref[...] = y2n.astype(o_ref.dtype)


def _banded_conv_weight(w_hwio, W, dtype, split_rows):
  """(3, 3, Cin, Cout) -> banded matmul weight over interior (unpadded) columns.

  Entry [dy, q*Cin + c, w*Cout + o] = w[dy, q - w + 1, c, o] if 0 <= q-w+1 < 3 else 0.
  Left/right zero-pad taps are dropped (they multiply exact zeros), so the lane
  axis stays dense.  Returns (3, W*Cin, W*Cout) if split_rows else (3*W*Cin, W*Cout).
  """
  KH, KW, Cin, Cout = w_hwio.shape
  q = jnp.arange(W)[:, None, None]       # input column
  wi = jnp.arange(W)[None, :, None]      # output column
  dx = jnp.arange(KW)[None, None, :]     # kernel tap
  onehot = (q == wi + dx - 1).astype(jnp.float32)                 # (W, W, KW)
  big = jnp.einsum("qwx,yxco->yqcwo", onehot, w_hwio.astype(jnp.float32))
  if split_rows:
    return big.reshape(KH, W * Cin, W * Cout).astype(dtype)
  return big.reshape(KH * W * Cin, W * Cout).astype(dtype)


def _tiled_affine(bias, gamma, beta, W):
  """Stack [bias, gamma, beta] and tile across the w positions of the lane axis."""
  stack = jnp.stack([bias, gamma, beta]).astype(jnp.float32)      # (3, C)
  return jnp.tile(stack, (1, W))                                  # (3, W*C)


def _group_avg_matrix(C, G, H, W):
  """(W*C, W*C) matrix: per-lane H-sums @ A = per-group mean broadcast to lanes."""
  Cpg = C // G
  grp = jnp.tile(jnp.arange(C) // Cpg, W)                         # (W*C,)
  same = (grp[:, None] == grp[None, :]).astype(jnp.float32)
  return same / float(H * W * Cpg)


def _pick_batch_block(N, H):
  """Fold batch into the matmul M dim (target >= 128 rows), grid length divides N."""
  target_rows, cap_rows = 128, 1024
  best = 1
  for d in range(1, N + 1):
    if N % d == 0 and d * H <= cap_rows:
      best = d
      if d * H >= target_rows:
        break
  return best


def double_conv(x_nchw, params, num_groups, *, compute_dtype=jnp.bfloat16,
                eps=1e-5):
  """DoubleConv forward.  Input/output NCHW to match PyTorch."""
  N, Cin, H, W = x_nchw.shape
  Cmid = params["w1"].shape[-1]
  Cout = params["w2"].shape[-1]
  # Reference module declares the 2nd GroupNorm with num_channels=mid_channels.
  assert Cout == Cmid, "module requires out_channels == mid_channels"
  assert Cmid % num_groups == 0
  Nb = _pick_batch_block(N, H)

  # NCHW -> NHWC -> pad H only -> flatten (w, c) into the lane axis.
  x = jnp.transpose(x_nchw, (0, 2, 3, 1)).astype(jnp.float32)
  xpH = jnp.pad(x, ((0, 0), (1, 1), (0, 0), (0, 0))).reshape(N, H + 2, W * Cin)
  # Prebuilt im2row LHS for conv1 (three H-shifted copies along lanes), bf16 cast
  # done here in XLA so the kernel's MXU operand arrives ready to use.
  lhs1 = jnp.concatenate([xpH[:, 0:H], xpH[:, 1:H + 1], xpH[:, 2:H + 2]],
                         axis=-1).astype(compute_dtype)           # (N, H, 3*W*Cin)

  w1 = _banded_conv_weight(params["w1"], W, compute_dtype, split_rows=False)
  w2 = _banded_conv_weight(params["w2"], W, compute_dtype, split_rows=True)
  p1 = _tiled_affine(params["b1"], params["gamma1"], params["beta1"], W)
  p2 = _tiled_affine(params["b2"], params["gamma2"], params["beta2"], W)
  a = _group_avg_matrix(Cmid, num_groups, H, W)   # shared: Cout == Cmid

  kernel = functools.partial(_double_conv_kernel, Nb=Nb, H=H, W=W, Cin=Cin,
                             Cmid=Cmid, Cout=Cout, eps=eps)

  out = pl.pallas_call(
      kernel,
      out_shape=jax.ShapeDtypeStruct((N, H, W * Cout), jnp.float32),
      grid_spec=pltpu.PrefetchScalarGridSpec(
          num_scalar_prefetch=0,
          grid=(N // Nb,),
          in_specs=[
              pl.BlockSpec((Nb, H, 3 * W * Cin), lambda n: (n, 0, 0)),
              pl.BlockSpec((3 * W * Cin, W * Cmid), lambda n: (0, 0)),
              pl.BlockSpec((3, W * Cmid), lambda n: (0, 0)),
              pl.BlockSpec((W * Cmid, W * Cmid), lambda n: (0, 0)),
              pl.BlockSpec((3, W * Cmid, W * Cout), lambda n: (0, 0, 0)),
              pl.BlockSpec((3, W * Cout), lambda n: (0, 0)),
          ],
          out_specs=pl.BlockSpec((Nb, H, W * Cout), lambda n: (n, 0, 0)),
          scratch_shapes=[pltpu.VMEM((Nb, H + 2, W * Cmid), compute_dtype)],
      ),
      compiler_params=pltpu.CompilerParams(
          dimension_semantics=("parallel",),
          vmem_limit_bytes=32 * 1024 * 1024,
      ),
  )(lhs1, w1, p1, a, w2, p2)

  out = out.reshape(N, H, W, Cout)
  return jnp.transpose(out, (0, 3, 1, 2))        # NHWC -> NCHW


def _reference_block(x_nhwc, w, b, gamma, beta, num_groups, eps=1e-5,
                     compute_dtype=jnp.bfloat16):
  """Pure-JAX reference with the same bf16-input / f32-accumulate matmuls."""
  y = lax.conv_general_dilated(
      x_nhwc.astype(compute_dtype), w.astype(compute_dtype),
      window_strides=(1, 1), padding=((1, 1), (1, 1)),
      dimension_numbers=("NHWC", "HWIO", "NHWC"),
      preferred_element_type=jnp.float32) + b
  y = y * jax.nn.sigmoid(y)
  N, H, W, C = y.shape
  G = num_groups
  yg = y.reshape(N, H, W, G, C // G)
  mu = jnp.mean(yg, axis=(1, 2, 4), keepdims=True)
  var = jnp.mean((yg - mu) ** 2, axis=(1, 2, 4), keepdims=True)
  yn = ((yg - mu) * lax.rsqrt(var + eps)).reshape(N, H, W, C)
  return yn * gamma + beta


if __name__ == "__main__":
  N, Cin, H, W = 2, 4, 16, 16
  Cmid = 8
  Cout = 8          # must equal mid_channels (see module note above)
  num_groups = 2

  key = jax.random.PRNGKey(0)
  k = jax.random.split(key, 9)
  x = jax.random.normal(k[0], (N, Cin, H, W), jnp.float32)
  params = {
      # conv weights stored HWIO (3, 3, Cin, Cout)
      "w1": jax.random.normal(k[1], (3, 3, Cin, Cmid), jnp.float32) * 0.1,
      "b1": jax.random.normal(k[2], (Cmid,), jnp.float32) * 0.05,
      "gamma1": 1.0 + 0.1 * jax.random.normal(k[3], (Cmid,), jnp.float32),
      "beta1": 0.05 * jax.random.normal(k[4], (Cmid,), jnp.float32),
      "w2": jax.random.normal(k[5], (3, 3, Cmid, Cout), jnp.float32) * 0.1,
      "b2": jax.random.normal(k[6], (Cout,), jnp.float32) * 0.05,
      "gamma2": 1.0 + 0.1 * jax.random.normal(k[7], (Cout,), jnp.float32),
      "beta2": 0.05 * jax.random.normal(k[8], (Cout,), jnp.float32),
  }

  out = double_conv(x, params, num_groups)
  out = jax.block_until_ready(out)

  # Cross-check against the pure-JAX reference.
  x_nhwc = jnp.transpose(x, (0, 2, 3, 1))
  ref = _reference_block(x_nhwc, params["w1"], params["b1"],
                         params["gamma1"], params["beta1"], num_groups)
  ref = _reference_block(ref, params["w2"], params["b2"],
                         params["gamma2"], params["beta2"], num_groups)
  ref = jnp.transpose(ref, (0, 3, 1, 2))

  assert out.shape == (N, Cout, H, W)
  max_err = float(jnp.max(jnp.abs(out - ref)))
  assert jnp.allclose(out, ref, atol=1e-2, rtol=1e-2), (
      f"mismatch vs reference: max abs err {max_err}")

  print("KERNEL_OK")
</pallas_src>

<mosaic_0001>
module attributes {stable_mosaic.version = 11 : i64} {
  func.func @_double_conv_kernel(%arg0: i32, %arg1: memref<2x16x192xbf16, #tpu.memory_space<vmem>>, %arg2: memref<192x128xbf16, #tpu.memory_space<vmem>>, %arg3: memref<3x128xf32, #tpu.memory_space<vmem>>, %arg4: memref<128x128xf32, #tpu.memory_space<vmem>>, %arg5: memref<3x128x128xbf16, #tpu.memory_space<vmem>>, %arg6: memref<3x128xf32, #tpu.memory_space<vmem>>, %arg7: memref<2x16x128xf32, #tpu.memory_space<vmem>>, %arg8: memref<2x18x128xbf16, #tpu.memory_space<vmem>>) attributes {dimension_semantics = [#tpu.dimension_semantics<parallel>], iteration_bounds = array<i64: 1>, scalar_prefetch = 0 : i64, scratch_operands = 1 : i64, tpu.core_type = #tpu.core_type<tc>, window_params = [{transform_indices = @transform_0, window_bounds = array<i64: 2, 16, 192>}, {pipeline_mode = #tpu.pipeline_mode<synchronous>, transform_indices = @transform_1, window_bounds = array<i64: 192, 128>}, {pipeline_mode = #tpu.pipeline_mode<synchronous>, transform_indices = @transform_2, window_bounds = array<i64: 3, 128>}, {pipeline_mode = #tpu.pipeline_mode<synchronous>, transform_indices = @transform_3, window_bounds = array<i64: 128, 128>}, {pipeline_mode = #tpu.pipeline_mode<synchronous>, transform_indices = @transform_4, window_bounds = array<i64: 3, 128, 128>}, {pipeline_mode = #tpu.pipeline_mode<synchronous>, transform_indices = @transform_5, window_bounds = array<i64: 3, 128>}, {transform_indices = @transform_6, window_bounds = array<i64: 2, 16, 128>}]} {
    %c0 = arith.constant 0 : index
    %c0_0 = arith.constant 0 : index
    %c0_1 = arith.constant 0 : index
    %0 = vector.load %arg1[%c0, %c0_0, %c0_1] : memref<2x16x192xbf16, #tpu.memory_space<vmem>>, vector<2x16x192xbf16>
    %1 = vector.shape_cast %0 : vector<2x16x192xbf16> to vector<32x192xbf16>
    %c0_2 = arith.constant 0 : index
    %c0_3 = arith.constant 0 : index
    %2 = vector.load %arg2[%c0_2, %c0_3] : memref<192x128xbf16, #tpu.memory_space<vmem>>, vector<192x128xbf16>
    %cst = arith.constant dense<0.000000e+00> : vector<32x128xf32>
    %3 = tpu.matmul %1, %2, %cst {dimension_numbers = #tpu.dot_dimension_numbers<[1], [0], [0], [1], [0, 0, 1, 1], [], []>} : vector<32x192xbf16>, vector<192x128xbf16>, vector<32x128xf32> -> vector<32x128xf32>
    %c0_4 = arith.constant 0 : index
    %c0_5 = arith.constant 0 : index
    %4 = vector.load %arg3[%c0_4, %c0_5] : memref<3x128xf32, #tpu.memory_space<vmem>>, vector<1x128xf32>
    %5 = vector.broadcast %4 : vector<1x128xf32> to vector<32x128xf32>
    %6 = arith.addf %3, %5 : vector<32x128xf32>
    %7 = arith.negf %6 : vector<32x128xf32>
    %8 = math.exp %7 : vector<32x128xf32>
    %cst_6 = arith.constant 1.000000e+00 : f32
    %9 = vector.broadcast %cst_6 : f32 to vector<32x128xf32>
    %10 = arith.addf %9, %8 : vector<32x128xf32>
    %11 = arith.divf %9, %10 : vector<32x128xf32>
    %12 = arith.mulf %6, %11 : vector<32x128xf32>
    %c1 = arith.constant 1 : index
    %c0_7 = arith.constant 0 : index
    %13 = vector.load %arg3[%c1, %c0_7] : memref<3x128xf32, #tpu.memory_space<vmem>>, vector<1x128xf32>
    %c2 = arith.constant 2 : index
    %c0_8 = arith.constant 0 : index
    %14 = vector.load %arg3[%c2, %c0_8] : memref<3x128xf32, #tpu.memory_space<vmem>>, vector<1x128xf32>
    %15 = vector.shape_cast %12 : vector<32x128xf32> to vector<2x16x128xf32>
    %cst_9 = arith.constant dense<0.000000e+00> : vector<2x128xf32>
    %16 = vector.multi_reduction <add>, %15, %cst_9 [1] : vector<2x16x128xf32> to vector<2x128xf32>
    %17 = arith.mulf %15, %15 : vector<2x16x128xf32>
    %cst_10 = arith.constant dense<0.000000e+00> : vector<2x128xf32>
    %18 = vector.multi_reduction <add>, %17, %cst_10 [1] : vector<2x16x128xf32> to vector<2x128xf32>
    %19 = tpu.concatenate %16, %18 in 0 : vector<2x128xf32>, vector<2x128xf32> -> vector<4x128xf32>
    %c0_11 = arith.constant 0 : index
    %c0_12 = arith.constant 0 : index
    %20 = vector.load %arg4[%c0_11, %c0_12] : memref<128x128xf32, #tpu.memory_space<vmem>>, vector<128x128xf32>
    %cst_13 = arith.constant dense<0.000000e+00> : vector<4x128xf32>
    %21 = tpu.matmul %19, %20, %cst_13 {dimension_numbers = #tpu.dot_dimension_numbers<[1], [0], [0], [1], [0, 0, 1, 1], [], []>} : vector<4x128xf32>, vector<128x128xf32>, vector<4x128xf32> -> vector<4x128xf32>
    %22 = vector.extract_strided_slice %21 {offsets = [0, 0], sizes = [2, 128], strides = [1, 1]} : vector<4x128xf32> to vector<2x128xf32>
    %23 = vector.extract_strided_slice %21 {offsets = [2, 0], sizes = [2, 128], strides = [1, 1]} : vector<4x128xf32> to vector<2x128xf32>
    %24 = arith.mulf %22, %22 : vector<2x128xf32>
    %25 = arith.subf %23, %24 : vector<2x128xf32>
    %cst_14 = arith.constant 0.000000e+00 : f32
    %26 = vector.broadcast %cst_14 : f32 to vector<2x128xf32>
    %27 = arith.maximumf %25, %26 : vector<2x128xf32>
    %cst_15 = arith.constant 9.99999974E-6 : f32
    %28 = vector.broadcast %cst_15 : f32 to vector<2x128xf32>
    %29 = arith.addf %27, %28 : vector<2x128xf32>
    %30 = math.rsqrt %29 : vector<2x128xf32>
    %31 = vector.broadcast %13 : vector<1x128xf32> to vector<2x128xf32>
    %32 = arith.mulf %30, %31 : vector<2x128xf32>
    %33 = arith.mulf %22, %32 : vector<2x128xf32>
    %34 = vector.broadcast %14 : vector<1x128xf32> to vector<2x128xf32>
    %35 = arith.subf %34, %33 : vector<2x128xf32>
    %36 = vector.shape_cast %32 : vector<2x128xf32> to vector<2x1x128xf32>
    %37 = vector.broadcast %36 : vector<2x1x128xf32> to vector<2x16x128xf32>
    %38 = arith.mulf %15, %37 : vector<2x16x128xf32>
    %39 = vector.shape_cast %35 : vector<2x128xf32> to vector<2x1x128xf32>
    %40 = vector.broadcast %39 : vector<2x1x128xf32> to vector<2x16x128xf32>
    %41 = arith.addf %38, %40 : vector<2x16x128xf32>
    %42 = arith.truncf %41 : vector<2x16x128xf32> to vector<2x16x128xbf16>
    %cst_16 = arith.constant 0.000000e+00 : bf16
    %43 = vector.broadcast %cst_16 : bf16 to vector<2x1x128xbf16>
    %c0_17 = arith.constant 0 : index
    %c0_18 = arith.constant 0 : index
    %c0_19 = arith.constant 0 : index
    %44 = vector.load %arg8[%c0_17, %c0_18, %c0_19] : memref<2x18x128xbf16, #tpu.memory_space<vmem>>, vector<2x1x128xbf16>
    tpu.vector_store %arg8[%c0_17, %c0_18, %c0_19], %43 {strides = array<i32>} : memref<2x18x128xbf16, #tpu.memory_space<vmem>>, vector<2x1x128xbf16>,
    %c0_20 = arith.constant 0 : index
    %c17 = arith.constant 17 : index
    %c0_21 = arith.constant 0 : index
    %45 = vector.load %arg8[%c0_20, %c17, %c0_21] : memref<2x18x128xbf16, #tpu.memory_space<vmem>>, vector<2x1x128xbf16>
    tpu.vector_store %arg8[%c0_20, %c17, %c0_21], %43 {strides = array<i32>} : memref<2x18x128xbf16, #tpu.memory_space<vmem>>, vector<2x1x128xbf16>,
    %c0_22 = arith.constant 0 : index
    %c1_23 = arith.constant 1 : index
    %c0_24 = arith.constant 0 : index
    %46 = vector.load %arg8[%c0_22, %c1_23, %c0_24] : memref<2x18x128xbf16, #tpu.memory_space<vmem>>, vector<2x16x128xbf16>
    tpu.vector_store %arg8[%c0_22, %c1_23, %c0_24], %42 {strides = array<i32>} : memref<2x18x128xbf16, #tpu.memory_space<vmem>>, vector<2x16x128xbf16>,
    %c0_25 = arith.constant 0 : index
    %c0_26 = arith.constant 0 : index
    %c0_27 = arith.constant 0 : index
    %47 = vector.load %arg8[%c0_25, %c0_26, %c0_27] : memref<2x18x128xbf16, #tpu.memory_space<vmem>>, vector<2x16x128xbf16>
    %48 = vector.shape_cast %47 : vector<2x16x128xbf16> to vector<32x128xbf16>
    %c0_28 = arith.constant 0 : index
    %c0_29 = arith.constant 0 : index
    %c0_30 = arith.constant 0 : index
    %49 = vector.load %arg5[%c0_28, %c0_29, %c0_30] : memref<3x128x128xbf16, #tpu.memory_space<vmem>>, vector<1x128x128xbf16>
    %50 = vector.shape_cast %49 : vector<1x128x128xbf16> to vector<128x128xbf16>
    %cst_31 = arith.constant dense<0.000000e+00> : vector<32x128xf32>
    %51 = tpu.matmul %48, %50, %cst_31 {dimension_numbers = #tpu.dot_dimension_numbers<[1], [0], [0], [1], [0, 0, 1, 1], [], []>} : vector<32x128xbf16>, vector<128x128xbf16>, vector<32x128xf32> -> vector<32x128xf32>
    %52 = vector.shape_cast %42 : vector<2x16x128xbf16> to vector<32x128xbf16>
    %c1_32 = arith.constant 1 : index
    %c0_33 = arith.constant 0 : index
    %c0_34 = arith.constant 0 : index
    %53 = vector.load %arg5[%c1_32, %c0_33, %c0_34] : memref<3x128x128xbf16, #tpu.memory_space<vmem>>, vector<1x128x128xbf16>
    %54 = vector.shape_cast %53 : vector<1x128x128xbf16> to vector<128x128xbf16>
    %cst_35 = arith.constant dense<0.000000e+00> : vector<32x128xf32>
    %55 = tpu.matmul %52, %54, %cst_35 {dimension_numbers = #tpu.dot_dimension_numbers<[1], [0], [0], [1], [0, 0, 1, 1], [], []>} : vector<32x128xbf16>, vector<128x128xbf16>, vector<32x128xf32> -> vector<32x128xf32>
    %56 = arith.addf %51, %55 : vector<32x128xf32>
    %c0_36 = arith.constant 0 : index
    %c2_37 = arith.constant 2 : index
    %c0_38 = arith.constant 0 : index
    %57 = vector.load %arg8[%c0_36, %c2_37, %c0_38] : memref<2x18x128xbf16, #tpu.memory_space<vmem>>, vector<2x16x128xbf16>
    %58 = vector.shape_cast %57 : vector<2x16x128xbf16> to vector<32x128xbf16>
    %c2_39 = arith.constant 2 : index
    %c0_40 = arith.constant 0 : index
    %c0_41 = arith.constant 0 : index
    %59 = vector.load %arg5[%c2_39, %c0_40, %c0_41] : memref<3x128x128xbf16, #tpu.memory_space<vmem>>, vector<1x128x128xbf16>
    %60 = vector.shape_cast %59 : vector<1x128x128xbf16> to vector<128x128xbf16>
    %cst_42 = arith.constant dense<0.000000e+00> : vector<32x128xf32>
    %61 = tpu.matmul %58, %60, %cst_42 {dimension_numbers = #tpu.dot_dimension_numbers<[1], [0], [0], [1], [0, 0, 1, 1], [], []>} : vector<32x128xbf16>, vector<128x128xbf16>, vector<32x128xf32> -> vector<32x128xf32>
    %62 = arith.addf %56, %61 : vector<32x128xf32>
    %c0_43 = arith.constant 0 : index
    %c0_44 = arith.constant 0 : index
    %63 = vector.load %arg6[%c0_43, %c0_44] : memref<3x128xf32, #tpu.memory_space<vmem>>, vector<1x128xf32>
    %64 = vector.broadcast %63 : vector<1x128xf32> to vector<32x128xf32>
    %65 = arith.addf %62, %64 : vector<32x128xf32>
    %66 = arith.negf %65 : vector<32x128xf32>
    %67 = math.exp %66 : vector<32x128xf32>
    %cst_45 = arith.constant 1.000000e+00 : f32
    %68 = vector.broadcast %cst_45 : f32 to vector<32x128xf32>
    %69 = arith.addf %68, %67 : vector<32x128xf32>
    %70 = arith.divf %68, %69 : vector<32x128xf32>
    %71 = arith.mulf %65, %70 : vector<32x128xf32>
    %c1_46 = arith.constant 1 : index
    %c0_47 = arith.constant 0 : index
    %72 = vector.load %arg6[%c1_46, %c0_47] : memref<3x128xf32, #tpu.memory_space<vmem>>, vector<1x128xf32>
    %c2_48 = arith.constant 2 : index
    %c0_49 = arith.constant 0 : index
    %73 = vector.load %arg6[%c2_48, %c0_49] : memref<3x128xf32, #tpu.memory_space<vmem>>, vector<1x128xf32>
    %74 = vector.shape_cast %71 : vector<32x128xf32> to vector<2x16x128xf32>
    %cst_50 = arith.constant dense<0.000000e+00> : vector<2x128xf32>
    %75 = vector.multi_reduction <add>, %74, %cst_50 [1] : vector<2x16x128xf32> to vector<2x128xf32>
    %76 = arith.mulf %74, %74 : vector<2x16x128xf32>
    %cst_51 = arith.constant dense<0.000000e+00> : vector<2x128xf32>
    %77 = vector.multi_reduction <add>, %76, %cst_51 [1] : vector<2x16x128xf32> to vector<2x128xf32>
    %78 = tpu.concatenate %75, %77 in 0 : vector<2x128xf32>, vector<2x128xf32> -> vector<4x128xf32>
    %c0_52 = arith.constant 0 : index
    %c0_53 = arith.constant 0 : index
    %79 = vector.load %arg4[%c0_52, %c0_53] : memref<128x128xf32, #tpu.memory_space<vmem>>, vector<128x128xf32>
    %cst_54 = arith.constant dense<0.000000e+00> : vector<4x128xf32>
    %80 = tpu.matmul %78, %79, %cst_54 {dimension_numbers = #tpu.dot_dimension_numbers<[1], [0], [0], [1], [0, 0, 1, 1], [], []>} : vector<4x128xf32>, vector<128x128xf32>, vector<4x128xf32> -> vector<4x128xf32>
    %81 = vector.extract_strided_slice %80 {offsets = [0, 0], sizes = [2, 128], strides = [1, 1]} : vector<4x128xf32> to vector<2x128xf32>
    %82 = vector.extract_strided_slice %80 {offsets = [2, 0], sizes = [2, 128], strides = [1, 1]} : vector<4x128xf32> to vector<2x128xf32>
    %83 = arith.mulf %81, %81 : vector<2x128xf32>
    %84 = arith.subf %82, %83 : vector<2x128xf32>
    %cst_55 = arith.constant 0.000000e+00 : f32
    %85 = vector.broadcast %cst_55 : f32 to vector<2x128xf32>
    %86 = arith.maximumf %84, %85 : vector<2x128xf32>
    %cst_56 = arith.constant 9.99999974E-6 : f32
    %87 = vector.broadcast %cst_56 : f32 to vector<2x128xf32>
    %88 = arith.addf %86, %87 : vector<2x128xf32>
    %89 = math.rsqrt %88 : vector<2x128xf32>
    %90 = vector.broadcast %72 : vector<1x128xf32> to vector<2x128xf32>
    %91 = arith.mulf %89, %90 : vector<2x128xf32>
    %92 = arith.mulf %81, %91 : vector<2x128xf32>
    %93 = vector.broadcast %73 : vector<1x128xf32> to vector<2x128xf32>
    %94 = arith.subf %93, %92 : vector<2x128xf32>
    %95 = vector.shape_cast %91 : vector<2x128xf32> to vector<2x1x128xf32>
    %96 = vector.broadcast %95 : vector<2x1x128xf32> to vector<2x16x128xf32>
    %97 = arith.mulf %74, %96 : vector<2x16x128xf32>
    %98 = vector.shape_cast %94 : vector<2x128xf32> to vector<2x1x128xf32>
    %99 = vector.broadcast %98 : vector<2x1x128xf32> to vector<2x16x128xf32>
    %100 = arith.addf %97, %99 : vector<2x16x128xf32>
    %c0_57 = arith.constant 0 : index
    %c0_58 = arith.constant 0 : index
    %c0_59 = arith.constant 0 : index
    %101 = vector.load %arg7[%c0_57, %c0_58, %c0_59] : memref<2x16x128xf32, #tpu.memory_space<vmem>>, vector<2x16x128xf32>
    tpu.vector_store %arg7[%c0_57, %c0_58, %c0_59], %100 {strides = array<i32>} : memref<2x16x128xf32, #tpu.memory_space<vmem>>, vector<2x16x128xf32>,
    return
  }
  func.func @transform_0(%arg0: i32) -> (i32, i32, i32) {
    %c0_i32 = arith.constant 0 : i32
    %c0_i32_0 = arith.constant 0 : i32
    %c0_i32_1 = arith.constant 0 : i32
    return %arg0, %c0_i32, %c0_i32_0 : i32, i32, i32
  }
  func.func @transform_1(%arg0: i32) -> (i32, i32) {
    %c0_i32 = arith.constant 0 : i32
    %c0_i32_0 = arith.constant 0 : i32
    %c0_i32_1 = arith.constant 0 : i32
    return %c0_i32, %c0_i32_0 : i32, i32
  }
  func.func @transform_2(%arg0: i32) -> (i32, i32) {
    %c0_i32 = arith.constant 0 : i32
    %c0_i32_0 = arith.constant 0 : i32
    %c0_i32_1 = arith.constant 0 : i32
    return %c0_i32, %c0_i32_0 : i32, i32
  }
  func.func @transform_3(%arg0: i32) -> (i32, i32) {
    %c0_i32 = arith.constant 0 : i32
    %c0_i32_0 = arith.constant 0 : i32
    %c0_i32_1 = arith.constant 0 : i32
    return %c0_i32, %c0_i32_0 : i32, i32
  }
  func.func @transform_4(%arg0: i32) -> (i32, i32, i32) {
    %c0_i32 = arith.constant 0 : i32
    %c0_i32_0 = arith.constant 0 : i32
    %c0_i32_1 = arith.constant 0 : i32
    %c0_i32_2 = arith.constant 0 : i32
    return %c0_i32, %c0_i32_0, %c0_i32_1 : i32, i32, i32
  }
  func.func @transform_5(%arg0: i32) -> (i32, i32) {
    %c0_i32 = arith.constant 0 : i32
    %c0_i32_0 = arith.constant 0 : i32
    %c0_i32_1 = arith.constant 0 : i32
    return %c0_i32, %c0_i32_0 : i32, i32
  }
  func.func @transform_6(%arg0: i32) -> (i32, i32, i32) {
    %c0_i32 = arith.constant 0 : i32
    %c0_i32_0 = arith.constant 0 : i32
    %c0_i32_1 = arith.constant 0 : i32
    return %arg0, %c0_i32, %c0_i32_0 : i32, i32, i32
  }
}

</mosaic_0001>

<llo_original>
// kernel: tpu_custom_call.1
$region0: #{tpu_custom_call.1}
  #allocation0 [shape = 'u32[]', space=smem, size = 0x4, offset = 0x4, fixed_abs, tag = 'smem constant byte address 0x4 - core index']
  #allocation1 [shape = 'u32[144,128]{1,0:T(1,128)}', space=vmem, size = 0x12000, scoped, tag = 'internal scratch']
  #allocation2 [shape = 'bf16[2,18,128]{2,1,0:T(8,128)(2,1)}', space=vmem, size = 0x3000, scoped, tag = 'scratch operand']
  %s0 = inlined_call_operand.hbm [shape: bf16[2,16,192], index: 0, kind: input, shape index: {}]
  %s1 = inlined_call_operand.hbm [shape: bf16[192,128], index: 1, kind: input, shape index: {}]
  %s2 = inlined_call_operand.vmem [shape: f32[3,128], index: 2, kind: input, shape index: {}]
  %s3 = inlined_call_operand.hbm [shape: f32[128,128], index: 3, kind: input, shape index: {}]
  %s4 = inlined_call_operand.hbm [shape: bf16[3,128,128], index: 4, kind: input, shape index: {}]
  %s5 = inlined_call_operand.vmem [shape: f32[3,128], index: 5, kind: input, shape index: {}]
  %s6 = inlined_call_operand.hbm [shape: f32[2,16,128], index: 6, kind: output, shape index: {}]
  %s7 = sld [smem:[#allocation0]]
  $region50: #{tpu_custom_call.1} parent=0
    _
  %s9 = ssub.s32 1, %s7
  %s10 = scalar_select 0, %s9, %s7
  $region1: #{tpu_custom_call.1} parent=0
    #allocation3 [shape = 'u8[16384]{0}', space=vmem, size = 0x4000, scoped, tag = 'input window, operand 0, single buffered']
    #allocation4 [shape = 's32[1]{0}', space=sflag, size = 0x4, scoped, tag = 'scoped memory for tpu_custom_call.1']
    #allocation5 [shape = 's32[1]{0}', space=sflag, size = 0x4, scoped, tag = 'scoped memory for tpu_custom_call.1']
    #allocation6 [shape = 'u8[49152]{0}', space=vmem, size = 0xc000, scoped, tag = 'input window, operand 1, single buffered']
    #allocation7 [shape = 's32[1]{0}', space=sflag, size = 0x4, scoped, tag = 'scoped memory for tpu_custom_call.1']
    #allocation8 [shape = 'u8[65536]{0}', space=vmem, size = 0x10000, scoped, tag = 'input window, operand 3, single buffered']
    #allocation9 [shape = 'u8[98304]{0}', space=vmem, size = 0x18000, scoped, tag = 'input window, operand 4, single buffered']
    #allocation10 [shape = 's32[1]{0}', space=sflag, size = 0x4, scoped, tag = 'scoped memory for tpu_custom_call.1']
    #allocation11 [shape = 'u8[16384]{0}', space=vmem, size = 0x4000, scoped, tag = 'output window, operand 0, single buffered']
    %11 = vsyncpa [#allocation4], 0
    %12 = vsyncpa [#allocation7], 0
    %13 = vsyncpa [#allocation10], 0
    %14 = vsyncpa [#allocation5], 0
    // Predicated region
    $region2: #{tpu_custom_call.1} parent=1 // pred_check
      _
    $region3: #{tpu_custom_call.1} parent=1 // pred_check_branch
      %16 = sbr.rel (0) target = $region5
    $region4: #{tpu_custom_call.1} parent=1 // pred_region
      %s18 = ssub.s32 512, 512
      %19 = vsyncadd [#allocation4], %s18
      %s20 = sshll.u32 [#allocation3], 4
      %s21 = int_to_ptr.vmem [resolvable:$true] %s20
      %26 = dma.hbm_to_vmem [thread:$0]  %s0, 512, %s21, [#allocation4], 128, 128, 8
    $region5: #{tpu_custom_call.1} parent=1 // pred_fallthru
      _
    // Predicated region
    $region6: #{tpu_custom_call.1} parent=1 // pred_check
      _
    $region7: #{tpu_custom_call.1} parent=1 // pred_check_branch
      %28 = sbr.rel (0) target = $region9
    $region8: #{tpu_custom_call.1} parent=1 // pred_region
      %s30 = ssub.s32 1536, 1536
      %31 = vsyncadd [#allocation7], %s30
      %s32 = sshll.u32 [#allocation6], 4
      %s33 = int_to_ptr.vmem [resolvable:$true] %s32
      %38 = dma.hbm_to_vmem [thread:$0]  %s1, 1536, %s33, [#allocation7], 64, 64, 4
    $region9: #{tpu_custom_call.1} parent=1 // pred_fallthru
      _
    // Predicated region
    $region10: #{tpu_custom_call.1} parent=1 // pred_check
      _
    $region11: #{tpu_custom_call.1} parent=1 // pred_check_branch
      %40 = sbr.rel (0) target = $region13
    $region12: #{tpu_custom_call.1} parent=1 // pred_region
      _
    $region13: #{tpu_custom_call.1} parent=1 // pred_fallthru
      _
    // Predicated region
    $region14: #{tpu_custom_call.1} parent=1 // pred_check
      _
    $region15: #{tpu_custom_call.1} parent=1 // pred_check_branch
      %42 = sbr.rel (0) target = $region17
    $region16: #{tpu_custom_call.1} parent=1 // pred_region
      %s44 = ssub.s32 2048, 2048
      %45 = vsyncadd [#allocation7], %s44
      %s46 = sshll.u32 [#allocation8], 4
      %s47 = int_to_ptr.vmem [resolvable:$true] %s46
      %52 = dma.hbm_to_vmem [thread:$0]  %s3, 2048, %s47, [#allocation7], 128, 128, 8
    $region17: #{tpu_custom_call.1} parent=1 // pred_fallthru
      _
    // Predicated region
    $region18: #{tpu_custom_call.1} parent=1 // pred_check
      _
    $region19: #{tpu_custom_call.1} parent=1 // pred_check_branch
      %54 = sbr.rel (0) target = $region21
    $region20: #{tpu_custom_call.1} parent=1 // pred_region
      %s56 = ssub.s32 3072, 3072
      %57 = vsyncadd [#allocation10], %s56
      %s58 = sshll.u32 [#allocation9], 4
      %s59 = int_to_ptr.vmem [resolvable:$true] %s58
      %64 = dma.hbm_to_vmem [thread:$0]  %s4, 3072, %s59, [#allocation10], 64, 64, 4
    $region21: #{tpu_custom_call.1} parent=1 // pred_fallthru
      _
    // Predicated region
    $region22: #{tpu_custom_call.1} parent=1 // pred_check
      _
    $region23: #{tpu_custom_call.1} parent=1 // pred_check_branch
      %66 = sbr.rel (0) target = $region25
    $region24: #{tpu_custom_call.1} parent=1 // pred_region
      _
    $region25: #{tpu_custom_call.1} parent=1 // pred_fallthru
      _
    // Predicated region
    $region26: #{tpu_custom_call.1} parent=1 // pred_check
      _
    $region27: #{tpu_custom_call.1} parent=1 // pred_check_branch
      %68 = sbr.rel (0) target = $region29
    $region28: #{tpu_custom_call.1} parent=1 // pred_region
      %69 = dma.done [#allocation4], 512
    $region29: #{tpu_custom_call.1} parent=1 // pred_fallthru
      _
    // Predicated region
    $region30: #{tpu_custom_call.1} parent=1 // pred_check
      _
    $region31: #{tpu_custom_call.1} parent=1 // pred_check_branch
      %71 = sbr.rel (0) target = $region33
    $region32: #{tpu_custom_call.1} parent=1 // pred_region
      %72 = dma.done [#allocation7], 1536
    $region33: #{tpu_custom_call.1} parent=1 // pred_fallthru
      _
    // Predicated region
    $region34: #{tpu_custom_call.1} parent=1 // pred_check
      _
    $region35: #{tpu_custom_call.1} parent=1 // pred_check_branch
      %74 = sbr.rel (0) target = $region37
    $region36: #{tpu_custom_call.1} parent=1 // pred_region
      %75 = dma.done [#allocation7], 2048
    $region37: #{tpu_custom_call.1} parent=1 // pred_fallthru
      _
    // Predicated region
    $region38: #{tpu_custom_call.1} parent=1 // pred_check
      _
    $region39: #{tpu_custom_call.1} parent=1 // pred_check_branch
      %77 = sbr.rel (0) target = $region41
    $region40: #{tpu_custom_call.1} parent=1 // pred_region
      %78 = dma.done [#allocation10], 3072
    $region41: #{tpu_custom_call.1} parent=1 // pred_fallthru
      _
    %v80 = vld [vmem:[#allocation3] sm:$0xff]
    %v81 = vld [vmem:[#allocation3 + $0x8] sm:$0xff]
    %v82 = vld [vmem:[#allocation3 + $0x10] sm:$0xff]
    %v83 = vld [vmem:[#allocation3 + $0x18] sm:$0xff]
    %v84 = vld [vmem:[#allocation6] sm:$0xf]
    %v85 = vld [vmem:[#allocation6 + $0x4] sm:$0xf]
    %v86 = vld [vmem:[#allocation6 + $0x8] sm:$0xf]
    %v87 = vld [vmem:[#allocation6 + $0xc] sm:$0xf]
    %v88 = vld [vmem:[#allocation6 + $0x10] sm:$0xf]
    %v89 = vld [vmem:[#allocation6 + $0x14] sm:$0xf]
    %v90 = vld [vmem:[#allocation6 + $0x18] sm:$0xf]
    %v91 = vld [vmem:[#allocation6 + $0x1c] sm:$0xf]
    %v92 = vld [vmem:[#allocation6 + $0x20] sm:$0xf]
    %v93 = vld [vmem:[#allocation6 + $0x24] sm:$0xf]
    %v94 = vld [vmem:[#allocation6 + $0x28] sm:$0xf]
    %v95 = vld [vmem:[#allocation6 + $0x2c] sm:$0xf]
    %v96 = vld [vmem:[#allocation6 + $0x30] sm:$0xf]
    %v97 = vld [vmem:[#allocation6 + $0x34] sm:$0xf]
    %v98 = vld [vmem:[#allocation6 + $0x38] sm:$0xf]
    %v99 = vld [vmem:[#allocation6 + $0x3c] sm:$0xf]
    %v100 = vld [vmem:[#allocation6 + $0x40] sm:$0xf]
    %v101 = vld [vmem:[#allocation6 + $0x44] sm:$0xf]
    %v102 = vld [vmem:[#allocation6 + $0x48] sm:$0xf]
    %v103 = vld [vmem:[#allocation6 + $0x4c] sm:$0xf]
    %v104 = vld [vmem:[#allocation6 + $0x50] sm:$0xf]
    %v105 = vld [vmem:[#allocation6 + $0x54] sm:$0xf]
    %v106 = vld [vmem:[#allocation6 + $0x58] sm:$0xf]
    %v107 = vld [vmem:[#allocation6 + $0x5c] sm:$0xf]
    %v108 = vld [vmem:[%s2] sm:$0x1]
    %v109 = vlaneseq
    %v110 = vshrl.u32 %v109, 7
    %v111 = vsub.s32 0, %v110
    %v112 = vrot.slane %v108, %v111
    %v117 = vunpack.c.l.b16 %v80
    %v118 = vunpack.c.h.b16 %v80
    %v119 = vunpack.c.l.b16 %v81
    %v120 = vunpack.c.h.b16 %v81
    %v121 = vunpack.c.l.b16 %v82
    %v122 = vunpack.c.h.b16 %v82
    %v123 = vunpack.c.l.b16 %v83
    %v124 = vunpack.c.h.b16 %v83
    %v125 = vpack.c.b16 %v119, %v117
    %v126 = vpack.c.b16 %v120, %v118
    %v127 = vpack.c.b16 %v123, %v121
    %v128 = vpack.c.b16 %v124, %v122
    %v155 = vunpack.c.l.b16 %v84
    %v156 = vunpack.c.l.b16 %v85
    %v157 = vunpack.c.l.b16 %v86
    %v158 = vunpack.c.l.b16 %v87
    %v159 = vunpack.c.l.b16 %v88
    %v160 = vunpack.c.l.b16 %v89
    %v161 = vunpack.c.l.b16 %v90
    %v162 = vunpack.c.l.b16 %v91
    %v163 = vunpack.c.l.b16 %v92
    %v164 = vunpack.c.l.b16 %v93
    %v165 = vunpack.c.l.b16 %v94
    %v166 = vunpack.c.l.b16 %v95
    %v167 = vunpack.c.l.b16 %v96
    %v168 = vunpack.c.l.b16 %v97
    %v169 = vunpack.c.l.b16 %v98
    %v170 = vunpack.c.l.b16 %v99
    %v171 = vunpack.c.l.b16 %v100
    %v172 = vunpack.c.l.b16 %v101
    %v173 = vunpack.c.l.b16 %v102
    %v174 = vunpack.c.l.b16 %v103
    %v175 = vunpack.c.l.b16 %v104
    %v176 = vunpack.c.l.b16 %v105
    %v177 = vunpack.c.l.b16 %v106
    %v178 = vunpack.c.l.b16 %v107
    %v179 = vpack.c.b16 %v156, %v155
    %v180 = vpack.c.b16 %v158, %v157
    %v181 = vpack.c.b16 %v160, %v159
    %v182 = vpack.c.b16 %v162, %v161
    %v183 = vpack.c.b16 %v164, %v163
    %v184 = vpack.c.b16 %v166, %v165
    %v185 = vpack.c.b16 %v168, %v167
    %v186 = vpack.c.b16 %v170, %v169
    %v187 = vpack.c.b16 %v172, %v171
    %v188 = vpack.c.b16 %v174, %v173
    %v189 = vpack.c.b16 %v176, %v175
    %v190 = vpack.c.b16 %v178, %v177
    %vm203 = vcmask 523264
    %v205 = vsel %vm203, %v126, 0
    %v208 = vsel %vm203, %v128, 0
    %210 = vmatprep.subr.bf16.mxu0 0
    %211 = vmatpush1.bf16.msra.mxu0 %v179
    %212 = vmatprep.subr.bf16.mxu0 0
    %213 = vmatpush1.bf16.msra.mxu0 %v180
    %214 = vmatprep.subr.bf16.mxu0 0
    %215 = vmatpush1.bf16.msra.mxu0 %v181
    %216 = vmatprep.subr.bf16.mxu0 0
    %217 = vmatpush1.bf16.msra.mxu0 %v182
    %218 = vmatprep.subr.bf16.mxu0 0
    %219 = vmatpush1.bf16.msra.mxu0 %v183
    %220 = vmatprep.subr.bf16.mxu0 0
    %221 = vmatpush1.bf16.msra.mxu0 %v184
    %222 = vmatprep.subr.bf16.mxu0 0
    %223 = vmatpush1.bf16.msra.mxu0 %v185
    %224 = vmatprep.subr.bf16.mxu0 0
    %225 = vmatpush1.bf16.msra.mxu0 %v186
    %226 = vmatprep.subr.bf16.mxu0 0
    %227 = vmatpush1.bf16.msra.mxu0 %v187
    %228 = vmatprep.subr.bf16.mxu0 0
    %229 = vmatpush1.bf16.msra.mxu0 %v188
    %230 = vmatprep.subr.bf16.mxu0 0
    %231 = vmatpush1.bf16.msra.mxu0 %v189
    %232 = vmatprep.subr.bf16.mxu0 0
    %233 = vmatpush1.bf16.msra.mxu0 %v190
    %234 = vmatprep.subr.bf16.mxu0 0
    %235 = vmatpush1.bf16.msra.mxu0 0
    %236 = vmatprep.subr.bf16.mxu0 0
    %237 = vmatpush1.bf16.msra.mxu0 0
    %238 = vmatprep.subr.bf16.mxu0 0
    %239 = vmatpush1.bf16.msra.mxu0 0
    %240 = vmatprep.subr.bf16.mxu0 0
    %241 = vmatpush1.bf16.msra.mxu0 0
    %242 = vmatprep.mubr.bf16.mxu0 %v205
    %243 = vmatmul.mubr.bf16.gmra.mrb[0].mxu0 %v125
    %v244 = vpop.f32.mrb[0].mxu0
    %v245 = vadd.f32 %v112, %v244
    %v246 = vpop.f32.mrb[0].mxu0
    %v247 = vpop.f32.mrb[0].mxu0
    %v248 = vadd.f32 %v112, %v247
    %v249 = vpop.f32.mrb[0].mxu0
    %250 = vmatprep.mubr.bf16.mxu0 %v208
    %251 = vmatmul.mubr.bf16.gmra.mrb[0].mxu0 %v127
    %v252 = vpop.f32.mrb[0].mxu0
    %v253 = vadd.f32 %v112, %v252
    %v254 = vpop.f32.mrb[0].mxu0
    %v255 = vpop.f32.mrb[0].mxu0
    %v256 = vadd.f32 %v112, %v255
    %v257 = vpop.f32.mrb[0].mxu0
    %258 = vdwg.mxu0
    %v259 = vxor.u32 %v245, 2147483648
    %v260 = vxor.u32 %v248, 2147483648
    %v261 = vxor.u32 %v253, 2147483648
    %v262 = vxor.u32 %v256, 2147483648
    %v263 = vmul.f32 %v259, 1.442695
    %v264 = vpow.pop %v263
    %v265 = vmul.f32 %v260, 1.442695
    %v266 = vpow.pop %v265
    %v267 = vmul.f32 %v261, 1.442695
    %v268 = vpow.pop %v267
    %v269 = vmul.f32 %v262, 1.442695
    %v270 = vpow.pop %v269
    %v271 = vadd.f32 %v264, 1.0
    %v272 = vadd.f32 %v266, 1.0
    %v273 = vadd.f32 %v268, 1.0
    %v274 = vadd.f32 %v270, 1.0
    %v275 = vrcp.pop %v271
    %v276 = vmul.f32 1.0, %v275
    %v277 = vrcp.pop %v272
    %v278 = vmul.f32 1.0, %v277
    %v279 = vrcp.pop %v273
    %v280 = vmul.f32 1.0, %v279
    %v281 = vrcp.pop %v274
    %v282 = vmul.f32 1.0, %v281
    %v283 = vmul.f32 %v245, %v276
    %v284 = vmul.f32 %v248, %v278
    %v285 = vmul.f32 %v253, %v280
    %v286 = vmul.f32 %v256, %v282
    %v287 = vld [vmem:[%s2 + $0x1] sm:$0x1]
    %v288 = vld [vmem:[%s2 + $0x2] sm:$0x1]
    %v289 = vadd.f32 %v283, %v284
    %v290 = vrot.slane %v289, 4
    %v291 = vadd.f32 %v289, %v290
    %v292 = vrot.slane %v291, 2
    %v293 = vadd.f32 %v291, %v292
    %v294 = vrot.slane %v293, 1
    %v295 = vadd.f32 %v293, %v294
    %v296 = vadd.f32 %v285, %v286
    %v297 = vrot.slane %v296, 4
    %v298 = vadd.f32 %v296, %v297
    %v299 = vrot.slane %v298, 2
    %v300 = vadd.f32 %v298, %v299
    %v301 = vrot.slane %v300, 1
    %v302 = vadd.f32 %v300, %v301
    %v303 = vmul.f32 %v283, %v283
    %v304 = vmul.f32 %v284, %v284
    %v305 = vmul.f32 %v285, %v285
    %v306 = vmul.f32 %v286, %v286
    %v307 = vadd.f32 %v303, %v304
    %v308 = vrot.slane %v307, 4
    %v309 = vadd.f32 %v307, %v308
    %v310 = vrot.slane %v309, 2
    %v311 = vadd.f32 %v309, %v310
    %v312 = vrot.slane %v311, 1
    %v313 = vadd.f32 %v311, %v312
    %v314 = vadd.f32 %v305, %v306
    %v315 = vrot.slane %v314, 4
    %v316 = vadd.f32 %v314, %v315
    %v317 = vrot.slane %v316, 2
    %v318 = vadd.f32 %v316, %v317
    %v319 = vrot.slane %v318, 1
    %v320 = vadd.f32 %v318, %v319
    %vm323 = vcmask 1041409
    %v324 = vsel %vm323, %v302, %v295
    %vm328 = vcmask 1043459
    %v329 = vsel %vm328, %v320, %v313
    %vm331 = vcmask 1041408
    %v332 = vsel %vm331, %v324, %v329
    %v333 = vld [vmem:[#allocation8] sm:$0xff]
    %v334 = vld [vmem:[#allocation8 + $0x8] sm:$0xff]
    %v335 = vld [vmem:[#allocation8 + $0x10] sm:$0xff]
    %v336 = vld [vmem:[#allocation8 + $0x18] sm:$0xff]
    %v337 = vld [vmem:[#allocation8 + $0x20] sm:$0xff]
    %v338 = vld [vmem:[#allocation8 + $0x28] sm:$0xff]
    %v339 = vld [vmem:[#allocation8 + $0x30] sm:$0xff]
    %v340 = vld [vmem:[#allocation8 + $0x38] sm:$0xff]
    %v341 = vld [vmem:[#allocation8 + $0x40] sm:$0xff]
    %v342 = vld [vmem:[#allocation8 + $0x48] sm:$0xff]
    %v343 = vld [vmem:[#allocation8 + $0x50] sm:$0xff]
    %v344 = vld [vmem:[#allocation8 + $0x58] sm:$0xff]
    %v345 = vld [vmem:[#allocation8 + $0x60] sm:$0xff]
    %v346 = vld [vmem:[#allocation8 + $0x68] sm:$0xff]
    %v347 = vld [vmem:[#allocation8 + $0x70] sm:$0xff]
    %v348 = vld [vmem:[#allocation8 + $0x78] sm:$0xff]
    %349 = vmatprep.subr.mxu0 0.0
    %350 = vmatpush1.msra.mxu0 %v333
    %351 = vmatprep.subr.mxu0 0.0
    %352 = vmatpush1.msra.mxu0 %v334
    %353 = vmatprep.subr.mxu0 0.0
    %354 = vmatpush1.msra.mxu0 %v335
    %355 = vmatprep.subr.mxu0 0.0
    %356 = vmatpush1.msra.mxu0 %v336
    %357 = vmatprep.subr.mxu0 0.0
    %358 = vmatpush1.msra.mxu0 %v337
    %359 = vmatprep.subr.mxu0 0.0
    %360 = vmatpush1.msra.mxu0 %v338
    %361 = vmatprep.subr.mxu0 0.0
    %362 = vmatpush1.msra.mxu0 %v339
    %363 = vmatprep.subr.mxu0 0.0
    %364 = vmatpush1.msra.mxu0 %v340
    %365 = vmatprep.subr.mxu0 0.0
    %366 = vmatpush1.msra.mxu0 %v341
    %367 = vmatprep.subr.mxu0 0.0
    %368 = vmatpush1.msra.mxu0 %v342
    %369 = vmatprep.subr.mxu0 0.0
    %370 = vmatpush1.msra.mxu0 %v343
    %371 = vmatprep.subr.mxu0 0.0
    %372 = vmatpush1.msra.mxu0 %v344
    %373 = vmatprep.subr.mxu0 0.0
    %374 = vmatpush1.msra.mxu0 %v345
    %375 = vmatprep.subr.mxu0 0.0
    %376 = vmatpush1.msra.mxu0 %v346
    %377 = vmatprep.subr.mxu0 0.0
    %378 = vmatpush1.msra.mxu0 %v347
    %379 = vmatprep.subr.mxu0 0.0
    %380 = vmatpush1.msra.mxu0 %v348
    %381 = vmatprep.subr.mxu0 0.0
    %382 = vmatpush1.msra.mxu0 0.0
    %383 = vmatprep.subr.mxu0 0.0
    %384 = vmatpush1.msra.mxu0 0.0
    %385 = vmatprep.subr.mxu0 0.0
    %386 = vmatpush1.msra.mxu0 0.0
    %387 = vmatprep.subr.mxu0 0.0
    %388 = vmatpush1.msra.mxu0 0.0
    %389 = vmatprep.subr.mxu0 0.0
    %390 = vmatpush1.msra.mxu0 0.0
    %391 = vmatprep.subr.mxu0 0.0
    %392 = vmatpush1.msra.mxu0 0.0
    %393 = vmatprep.subr.mxu0 0.0
    %394 = vmatpush1.msra.mxu0 0.0
    %395 = vmatprep.subr.mxu0 0.0
    %396 = vmatpush1.msra.mxu0 0.0
    %397 = vmatprep.subr.mxu0 0.0
    %398 = vmatpush1.msra.mxu0 0.0
    %399 = vmatprep.subr.mxu0 0.0
    %400 = vmatpush1.msra.mxu0 0.0
    %401 = vmatprep.subr.mxu0 0.0
    %402 = vmatpush1.msra.mxu0 0.0
    %403 = vmatprep.subr.mxu0 0.0
    %404 = vmatpush1.msra.mxu0 0.0
    %405 = vmatprep.subr.mxu0 0.0
    %406 = vmatpush1.msra.mxu0 0.0
    %407 = vmatprep.subr.mxu0 0.0
    %408 = vmatpush1.msra.mxu0 0.0
    %409 = vmatprep.subr.mxu0 0.0
    %410 = vmatpush1.msra.mxu0 0.0
    %411 = vmatprep.subr.mxu0 0.0
    %412 = vmatpush1.msra.mxu0 0.0
    %413 = vmatprep.mubr.f32.mxu0 0.0
    %414 = vmatmul.mubr.f32.gmra.mrb[0].mxu0 %v332
    %v415 = vpop.f32.mrb[0].mxu0
    %v416 = vadd.f32 0.0, %v415
    %v417 = vpop.f32.mrb[0].mxu0
    %418 = vdwg.mxu0
    %v419 = vmul.f32 %v416, %v416
    %v421 = vrot.slane %v419, 6
    %v423 = vsub.f32 %v416, %v421
    %v424 = vmax.f32 %v423, 0.0
    %v425 = vadd.f32 %v424, 1e-05
    %v426 = vrsqrt.pop %v425
    %v427 = vlaneseq
    %v428 = vshrl.u32 %v427, 7
    %v429 = vsub.s32 0, %v428
    %v430 = vrot.slane %v287, %v429
    %v431 = vmul.f32 %v426, %v430
    %v433 = vrot.slane %v431, 2
    %v435 = vmul.f32 %v416, %v433
    %v436 = vlaneseq
    %v437 = vshrl.u32 %v436, 7
    %v438 = vsub.s32 0, %v437
    %v439 = vrot.slane %v288, %v438
    %v440 = vsub.f32 %v439, %v435
    %v442 = vunpack.c.l.s4 1966171168
    %v443 = vunpack.c.0.s8 %v442
    %v444 = vlaneseq
    %v445 = vshrl.u32 %v444, 7
    %v446 = vsub.s32 %v443, %v445
    %v447 = vrot.slane %v431, %v446
    %v448 = vcombine.high %v447, %v447
    %v450 = vunpack.c.l.s4 1966171168
    %v451 = vunpack.c.0.s8 %v450
    %v452 = vlaneseq
    %v453 = vshrl.u32 %v452, 7
    %v454 = vsub.s32 %v451, %v453
    %v455 = vrot.slane %v447, %v454
    %v457 = vunpack.c.l.s4 1966171168
    %v458 = vunpack.c.0.s8 %v457
    %v459 = vlaneseq
    %v460 = vshrl.u32 %v459, 7
    %v461 = vsub.s32 %v458, %v460
    %v462 = vrot.slane %v448, %v461
    %v463 = vcombine.high %v455, %v455
    %v464 = vcombine.high %v462, %v462
    %v465 = vlaneseq
    %v466 = vshrl.u32 %v465, 7
    %v467 = vsub.s32 0, %v466
    %v468 = vrot.slane %v463, %v467
    %v469 = vlaneseq
    %v470 = vshrl.u32 %v469, 7
    %v471 = vsub.s32 0, %v470
    %v472 = vrot.slane %v464, %v471
    %v475 = vmul.f32 %v283, %v468
    %v476 = vmul.f32 %v284, %v468
    %v477 = vmul.f32 %v285, %v472
    %v478 = vmul.f32 %v286, %v472
    %v481 = vunpack.c.l.s4 1966171168
    %v482 = vunpack.c.0.s8 %v481
    %v483 = vlaneseq
    %v484 = vshrl.u32 %v483, 7
    %v485 = vsub.s32 %v482, %v484
    %v486 = vrot.slane %v440, %v485
    %v487 = vcombine.high %v486, %v486
    %v489 = vunpack.c.l.s4 1966171168
    %v490 = vunpack.c.0.s8 %v489
    %v491 = vlaneseq
    %v492 = vshrl.u32 %v491, 7
    %v493 = vsub.s32 %v490, %v492
    %v494 = vrot.slane %v486, %v493
    %v496 = vunpack.c.l.s4 1966171168
    %v497 = vunpack.c.0.s8 %v496
    %v498 = vlaneseq
    %v499 = vshrl.u32 %v498, 7
    %v500 = vsub.s32 %v497, %v499
    %v501 = vrot.slane %v487, %v500
    %v502 = vlaneseq
    %v503 = vshrl.u32 %v502, 7
    %v504 = vsub.s32 0, %v503
    %v505 = vrot.slane %v494, %v504
    %v506 = vlaneseq
    %v507 = vshrl.u32 %v506, 7
    %v508 = vsub.s32 0, %v507
    %v509 = vrot.slane %v501, %v508
    %v512 = vadd.f32 %v475, %v505
    %v513 = vadd.f32 %v476, %v505
    %v514 = vadd.f32 %v477, %v509
    %v515 = vadd.f32 %v478, %v509
    %v516 = vpack.c.bf16 %v513, %v512
    %v517 = vpack.c.bf16 %v515, %v514
    %vm518 = vcmask 1040384
    %vm519 = vsmask.f32 256
    %vm520 = vmand %vm518, %vm519
    %v521 = vld [vmem:[#allocation2] sm:$0x1]
    %v522 = vsel %vm520, 0, %v521
    %523 = vst [vmem:[#allocation2] sm:$0x1] %v522
    %v524 = vld [vmem:[#allocation2 + $0xc] sm:$0x1]
    %v525 = vsel %vm520, 0, %v524
    %526 = vst [vmem:[#allocation2 + $0xc] sm:$0x1] %v525
    %vm527 = vsmask.f32 7938
    %vm528 = vmand %vm518, %vm527
    %v529 = vld [vmem:[#allocation2 + $0x8] sm:$0x1]
    %v530 = vsel %vm528, 0, %v529
    %531 = vst [vmem:[#allocation2 + $0x8] sm:$0x1] %v530
    %v532 = vld [vmem:[#allocation2 + $0x14] sm:$0x1]
    %v533 = vsel %vm528, 0, %v532
    %534 = vst [vmem:[#allocation2 + $0x14] sm:$0x1] %v533
    %v537 = vunpack.c.l.b16 %v516
    %v538 = vunpack.c.h.b16 %v516
    %v539 = vunpack.c.l.b16 %v517
    %v540 = vunpack.c.h.b16 %v517
    %v541 = vpack.c.b16 %v537, %v537
    %v542 = vpack.c.b16 %v538, %v538
    %v543 = vpack.c.b16 %v539, %v539
    %v544 = vpack.c.b16 %v540, %v540
    %vm545 = vsmask.f32 4368
    %vm546 = vmor %vm519, %vm545
    %v548 = vshrl.u32 %v541, 16
    %v550 = vrot.slane %v548, 7
    %v551 = vshll.u32 %v541, 16
    %v553 = vor.u32 %v550, %v551
    %v554 = vrot.slane %v550, 4
    %v556 = vshrl.u32 %v542, 16
    %v558 = vrot.slane %v556, 7
    %v559 = vshll.u32 %v542, 16
    %v561 = vor.u32 %v558, %v559
    %v562 = vsel %vm546, %v554, %v561
    %v563 = vrot.slane %v558, 4
    %v565 = vshrl.u32 %v543, 16
    %v567 = vrot.slane %v565, 7
    %v568 = vshll.u32 %v543, 16
    %v570 = vor.u32 %v567, %v568
    %v571 = vrot.slane %v567, 4
    %v573 = vshrl.u32 %v544, 16
    %v575 = vrot.slane %v573, 7
    %v576 = vshll.u32 %v544, 16
    %v578 = vor.u32 %v575, %v576
    %v579 = vsel %vm546, %v571, %v578
    %v580 = vrot.slane %v575, 4
    %vm587 = vcmask 1043456
    %vm588 = vmand %vm587, %vm527
    %v589 = vld [vmem:[#allocation2] sm:$0xf]
    %v590 = vsel %vm588, %v553, %v589
    %591 = vst [vmem:[#allocation2] sm:$0xf] %v590
    %592 = vst [vmem:[#allocation2 + $0x4] sm:$0xf] %v562
    %v593 = vld [vmem:[#allocation2 + $0x8] sm:$0x1]
    %v594 = vsel %vm520, %v563, %v593
    %595 = vst [vmem:[#allocation2 + $0x8] sm:$0x1] %v594
    %v596 = vld [vmem:[#allocation2 + $0xc] sm:$0xf]
    %v597 = vsel %vm588, %v570, %v596
    %598 = vst [vmem:[#allocation2 + $0xc] sm:$0xf] %v597
    %599 = vst [vmem:[#allocation2 + $0x10] sm:$0xf] %v579
    %v600 = vld [vmem:[#allocation2 + $0x14] sm:$0x1]
    %v601 = vsel %vm520, %v580, %v600
    %602 = vst [vmem:[#allocation2 + $0x14] sm:$0x1] %v601
    %v603 = vld [vmem:[#allocation2] sm:$0xf]
    %v604 = vld [vmem:[#allocation2 + $0x4] sm:$0xf]
    %v605 = vld [vmem:[#allocation2 + $0xc] sm:$0xf]
    %v606 = vld [vmem:[#allocation2 + $0x10] sm:$0xf]
    %v607 = vld [vmem:[#allocation9] sm:$0xf]
    %v608 = vld [vmem:[#allocation9 + $0x4] sm:$0xf]
    %v609 = vld [vmem:[#allocation9 + $0x8] sm:$0xf]
    %v610 = vld [vmem:[#allocation9 + $0xc] sm:$0xf]
    %v611 = vld [vmem:[#allocation9 + $0x10] sm:$0xf]
    %v612 = vld [vmem:[#allocation9 + $0x14] sm:$0xf]
    %v613 = vld [vmem:[#allocation9 + $0x18] sm:$0xf]
    %v614 = vld [vmem:[#allocation9 + $0x1c] sm:$0xf]
    %v615 = vld [vmem:[#allocation9 + $0x20] sm:$0xf]
    %v616 = vld [vmem:[#allocation9 + $0x24] sm:$0xf]
    %v617 = vld [vmem:[#allocation9 + $0x28] sm:$0xf]
    %v618 = vld [vmem:[#allocation9 + $0x2c] sm:$0xf]
    %v619 = vld [vmem:[#allocation9 + $0x30] sm:$0xf]
    %v620 = vld [vmem:[#allocation9 + $0x34] sm:$0xf]
    %v621 = vld [vmem:[#allocation9 + $0x38] sm:$0xf]
    %v622 = vld [vmem:[#allocation9 + $0x3c] sm:$0xf]
    %s623 = scalar_lea.vmem [#allocation9], 64
    %v624 = vld [vmem:[%s623] sm:$0xf]
    %v625 = vld [vmem:[%s623 + $0x4] sm:$0xf]
    %v626 = vld [vmem:[%s623 + $0x8] sm:$0xf]
    %v627 = vld [vmem:[%s623 + $0xc] sm:$0xf]
    %v628 = vld [vmem:[%s623 + $0x10] sm:$0xf]
    %v629 = vld [vmem:[%s623 + $0x14] sm:$0xf]
    %v630 = vld [vmem:[%s623 + $0x18] sm:$0xf]
    %v631 = vld [vmem:[%s623 + $0x1c] sm:$0xf]
    %v632 = vld [vmem:[%s623 + $0x20] sm:$0xf]
    %v633 = vld [vmem:[%s623 + $0x24] sm:$0xf]
    %v634 = vld [vmem:[%s623 + $0x28] sm:$0xf]
    %v635 = vld [vmem:[%s623 + $0x2c] sm:$0xf]
    %v636 = vld [vmem:[%s623 + $0x30] sm:$0xf]
    %v637 = vld [vmem:[%s623 + $0x34] sm:$0xf]
    %v638 = vld [vmem:[%s623 + $0x38] sm:$0xf]
    %v639 = vld [vmem:[%s623 + $0x3c] sm:$0xf]
    %v656 = vunpack.c.l.b16 %v624
    %v657 = vunpack.c.l.b16 %v625
    %v658 = vunpack.c.l.b16 %v626
    %v659 = vunpack.c.l.b16 %v627
    %v660 = vunpack.c.l.b16 %v628
    %v661 = vunpack.c.l.b16 %v629
    %v662 = vunpack.c.l.b16 %v630
    %v663 = vunpack.c.l.b16 %v631
    %v664 = vunpack.c.l.b16 %v632
    %v665 = vunpack.c.l.b16 %v633
    %v666 = vunpack.c.l.b16 %v634
    %v667 = vunpack.c.l.b16 %v635
    %v668 = vunpack.c.l.b16 %v636
    %v669 = vunpack.c.l.b16 %v637
    %v670 = vunpack.c.l.b16 %v638
    %v671 = vunpack.c.l.b16 %v639
    %v672 = vpack.c.b16 %v657, %v656
    %v673 = vpack.c.b16 %v659, %v658
    %v674 = vpack.c.b16 %v661, %v660
    %v675 = vpack.c.b16 %v663, %v662
    %v676 = vpack.c.b16 %v665, %v664
    %v677 = vpack.c.b16 %v667, %v666
    %v678 = vpack.c.b16 %v669, %v668
    %v679 = vpack.c.b16 %v671, %v670
    %688 = vmatprep.subr.bf16.mxu0 0
    %689 = vmatpush1.bf16.msra.mxu0 %v672
    %690 = vmatprep.subr.bf16.mxu0 0
    %691 = vmatpush1.bf16.msra.mxu0 %v673
    %692 = vmatprep.subr.bf16.mxu0 0
    %693 = vmatpush1.bf16.msra.mxu0 %v674
    %694 = vmatprep.subr.bf16.mxu0 0
    %695 = vmatpush1.bf16.msra.mxu0 %v675
    %696 = vmatprep.subr.bf16.mxu0 0
    %697 = vmatpush1.bf16.msra.mxu0 %v676
    %698 = vmatprep.subr.bf16.mxu0 0
    %699 = vmatpush1.bf16.msra.mxu0 %v677
    %700 = vmatprep.subr.bf16.mxu0 0
    %701 = vmatpush1.bf16.msra.mxu0 %v678
    %702 = vmatprep.subr.bf16.mxu0 0
    %703 = vmatpush1.bf16.msra.mxu0 %v679
    %704 = vmatprep.subr.bf16.mxu0 0
    %705 = vmatpush1.bf16.msra.mxu0 0
    %706 = vmatprep.subr.bf16.mxu0 0
    %707 = vmatpush1.bf16.msra.mxu0 0
    %708 = vmatprep.subr.bf16.mxu0 0
    %709 = vmatpush1.bf16.msra.mxu0 0
    %710 = vmatprep.subr.bf16.mxu0 0
    %711 = vmatpush1.bf16.msra.mxu0 0
    %712 = vmatprep.subr.bf16.mxu0 0
    %713 = vmatpush1.bf16.msra.mxu0 0
    %714 = vmatprep.subr.bf16.mxu0 0
    %715 = vmatpush1.bf16.msra.mxu0 0
    %716 = vmatprep.subr.bf16.mxu0 0
    %717 = vmatpush1.bf16.msra.mxu0 0
    %718 = vmatprep.subr.bf16.mxu0 0
    %719 = vmatpush1.bf16.msra.mxu0 0
    %720 = vmatprep.mubr.bf16.mxu0 0
    %721 = vmatmul.mubr.bf16.gmra.mrb[0].mxu0 %v516
    %v722 = vpop.f32.mrb[0].mxu0
    %v723 = vadd.f32 0.0, %v722
    %v724 = vpop.f32.mrb[0].mxu0
    %v725 = vpop.f32.mrb[0].mxu0
    %v726 = vadd.f32 0.0, %v725
    %v727 = vpop.f32.mrb[0].mxu0
    %728 = vmatprep.mubr.bf16.mxu0 0
    %729 = vmatmul.mubr.bf16.gmra.mrb[0].mxu0 %v517
    %v730 = vpop.f32.mrb[0].mxu0
    %v731 = vadd.f32 0.0, %v730
    %v732 = vpop.f32.mrb[0].mxu0
    %v733 = vpop.f32.mrb[0].mxu0
    %v734 = vadd.f32 0.0, %v733
    %v735 = vpop.f32.mrb[0].mxu0
    %736 = vdwg.mxu0
    %v741 = vunpack.c.l.b16 %v603
    %v742 = vunpack.c.l.b16 %v604
    %v743 = vunpack.c.l.b16 %v605
    %v744 = vunpack.c.l.b16 %v606
    %v745 = vpack.c.b16 %v742, %v741
    %v746 = vpack.c.b16 %v744, %v743
    %v765 = vunpack.c.l.b16 %v607
    %v766 = vunpack.c.l.b16 %v608
    %v767 = vunpack.c.l.b16 %v609
    %v768 = vunpack.c.l.b16 %v610
    %v769 = vunpack.c.l.b16 %v611
    %v770 = vunpack.c.l.b16 %v612
    %v771 = vunpack.c.l.b16 %v613
    %v772 = vunpack.c.l.b16 %v614
    %v773 = vunpack.c.l.b16 %v615
    %v774 = vunpack.c.l.b16 %v616
    %v775 = vunpack.c.l.b16 %v617
    %v776 = vunpack.c.l.b16 %v618
    %v777 = vunpack.c.l.b16 %v619
    %v778 = vunpack.c.l.b16 %v620
    %v779 = vunpack.c.l.b16 %v621
    %v780 = vunpack.c.l.b16 %v622
    %v781 = vpack.c.b16 %v766, %v765
    %v782 = vpack.c.b16 %v768, %v767
    %v783 = vpack.c.b16 %v770, %v769
    %v784 = vpack.c.b16 %v772, %v771
    %v785 = vpack.c.b16 %v774, %v773
    %v786 = vpack.c.b16 %v776, %v775
    %v787 = vpack.c.b16 %v778, %v777
    %v788 = vpack.c.b16 %v780, %v779
    %797 = vmatprep.subr.bf16.mxu0 0
    %798 = vmatpush1.bf16.msra.mxu0 %v781
    %799 = vmatprep.subr.bf16.mxu0 0
    %800 = vmatpush1.bf16.msra.mxu0 %v782
    %801 = vmatprep.subr.bf16.mxu0 0
    %802 = vmatpush1.bf16.msra.mxu0 %v783
    %803 = vmatprep.subr.bf16.mxu0 0
    %804 = vmatpush1.bf16.msra.mxu0 %v784
    %805 = vmatprep.subr.bf16.mxu0 0
    %806 = vmatpush1.bf16.msra.mxu0 %v785
    %807 = vmatprep.subr.bf16.mxu0 0
    %808 = vmatpush1.bf16.msra.mxu0 %v786
    %809 = vmatprep.subr.bf16.mxu0 0
    %810 = vmatpush1.bf16.msra.mxu0 %v787
    %811 = vmatprep.subr.bf16.mxu0 0
    %812 = vmatpush1.bf16.msra.mxu0 %v788
    %813 = vmatprep.subr.bf16.mxu0 0
    %814 = vmatpush1.bf16.msra.mxu0 0
    %815 = vmatprep.subr.bf16.mxu0 0
    %816 = vmatpush1.bf16.msra.mxu0 0
    %817 = vmatprep.subr.bf16.mxu0 0
    %818 = vmatpush1.bf16.msra.mxu0 0
    %819 = vmatprep.subr.bf16.mxu0 0
    %820 = vmatpush1.bf16.msra.mxu0 0
    %821 = vmatprep.subr.bf16.mxu0 0
    %822 = vmatpush1.bf16.msra.mxu0 0
    %823 = vmatprep.subr.bf16.mxu0 0
    %824 = vmatpush1.bf16.msra.mxu0 0
    %825 = vmatprep.subr.bf16.mxu0 0
    %826 = vmatpush1.bf16.msra.mxu0 0
    %827 = vmatprep.subr.bf16.mxu0 0
    %828 = vmatpush1.bf16.msra.mxu0 0
    %829 = vmatprep.mubr.bf16.mxu0 0
    %830 = vmatmul.mubr.bf16.gmra.mrb[0].mxu0 %v745
    %v831 = vpop.f32.mrb[0].mxu0
    %v832 = vadd.f32 %v723, %v831
    %v833 = vpop.f32.mrb[0].mxu0
    %v834 = vpop.f32.mrb[0].mxu0
    %v835 = vadd.f32 %v726, %v834
    %v836 = vpop.f32.mrb[0].mxu0
    %837 = vmatprep.mubr.bf16.mxu0 0
    %838 = vmatmul.mubr.bf16.gmra.mrb[0].mxu0 %v746
    %v839 = vpop.f32.mrb[0].mxu0
    %v840 = vadd.f32 %v731, %v839
    %v841 = vpop.f32.mrb[0].mxu0
    %v842 = vpop.f32.mrb[0].mxu0
    %v843 = vadd.f32 %v734, %v842
    %v844 = vpop.f32.mrb[0].mxu0
    %845 = vdwg.mxu0
    %v846 = vld [vmem:[#allocation2] sm:$0xe]
    %v847 = vld [vmem:[#allocation2 + $0x4] sm:$0xf]
    %v848 = vld [vmem:[#allocation2 + $0x8] sm:$0x1]
    %v849 = vld [vmem:[#allocation2 + $0xc] sm:$0xe]
    %v850 = vld [vmem:[#allocation2 + $0x10] sm:$0xf]
    %v851 = vld [vmem:[#allocation2 + $0x14] sm:$0x1]
    %vm858 = vcmask 1042432
    %vm859 = vcmask 1046532
    %vm860 = vmor %vm858, %vm859
    %v861 = vrot.slane %v846, 5
    %v862 = vrot.slane %v861, 4
    %v863 = vrot.slane %v847, 5
    %v864 = vsel %vm860, %v862, %v863
    %v865 = vrot.slane %v863, 4
    %v866 = vrot.slane %v848, 5
    %v867 = vsel %vm860, %v865, %v866
    %v868 = vrot.slane %v849, 5
    %v869 = vrot.slane %v868, 4
    %v870 = vrot.slane %v850, 5
    %v871 = vsel %vm860, %v869, %v870
    %v872 = vrot.slane %v870, 4
    %v873 = vrot.slane %v851, 5
    %v874 = vsel %vm860, %v872, %v873
    %s875 = scalar_lea.vmem [#allocation9], 128
    %v876 = vld [vmem:[%s875] sm:$0xf]
    %v877 = vld [vmem:[%s875 + $0x4] sm:$0xf]
    %v878 = vld [vmem:[%s875 + $0x8] sm:$0xf]
    %v879 = vld [vmem:[%s875 + $0xc] sm:$0xf]
    %v880 = vld [vmem:[%s875 + $0x10] sm:$0xf]
    %v881 = vld [vmem:[%s875 + $0x14] sm:$0xf]
    %v882 = vld [vmem:[%s875 + $0x18] sm:$0xf]
    %v883 = vld [vmem:[%s875 + $0x1c] sm:$0xf]
    %v884 = vld [vmem:[%s875 + $0x20] sm:$0xf]
    %v885 = vld [vmem:[%s875 + $0x24] sm:$0xf]
    %v886 = vld [vmem:[%s875 + $0x28] sm:$0xf]
    %v887 = vld [vmem:[%s875 + $0x2c] sm:$0xf]
    %v888 = vld [vmem:[%s875 + $0x30] sm:$0xf]
    %v889 = vld [vmem:[%s875 + $0x34] sm:$0xf]
    %v890 = vld [vmem:[%s875 + $0x38] sm:$0xf]
    %v891 = vld [vmem:[%s875 + $0x3c] sm:$0xf]
    %v892 = vunpack.c.l.b16 %v864
    %v893 = vunpack.c.l.b16 %v867
    %v894 = vunpack.c.l.b16 %v871
    %v895 = vunpack.c.l.b16 %v874
    %v896 = vpack.c.b16 %v893, %v892
    %v897 = vpack.c.b16 %v895, %v894
    %v916 = vunpack.c.l.b16 %v876
    %v917 = vunpack.c.l.b16 %v877
    %v918 = vunpack.c.l.b16 %v878
    %v919 = vunpack.c.l.b16 %v879
    %v920 = vunpack.c.l.b16 %v880
    %v921 = vunpack.c.l.b16 %v881
    %v922 = vunpack.c.l.b16 %v882
    %v923 = vunpack.c.l.b16 %v883
    %v924 = vunpack.c.l.b16 %v884
    %v925 = vunpack.c.l.b16 %v885
    %v926 = vunpack.c.l.b16 %v886
    %v927 = vunpack.c.l.b16 %v887
    %v928 = vunpack.c.l.b16 %v888
    %v929 = vunpack.c.l.b16 %v889
    %v930 = vunpack.c.l.b16 %v890
    %v931 = vunpack.c.l.b16 %v891
    %v932 = vpack.c.b16 %v917, %v916
    %v933 = vpack.c.b16 %v919, %v918
    %v934 = vpack.c.b16 %v921, %v920
    %v935 = vpack.c.b16 %v923, %v922
    %v936 = vpack.c.b16 %v925, %v924
    %v937 = vpack.c.b16 %v927, %v926
    %v938 = vpack.c.b16 %v929, %v928
    %v939 = vpack.c.b16 %v931, %v930
    %948 = vmatprep.subr.bf16.mxu0 0
    %949 = vmatpush1.bf16.msra.mxu0 %v932
    %950 = vmatprep.subr.bf16.mxu0 0
    %951 = vmatpush1.bf16.msra.mxu0 %v933
    %952 = vmatprep.subr.bf16.mxu0 0
    %953 = vmatpush1.bf16.msra.mxu0 %v934
    %954 = vmatprep.subr.bf16.mxu0 0
    %955 = vmatpush1.bf16.msra.mxu0 %v935
    %956 = vmatprep.subr.bf16.mxu0 0
    %957 = vmatpush1.bf16.msra.mxu0 %v936
    %958 = vmatprep.subr.bf16.mxu0 0
    %959 = vmatpush1.bf16.msra.mxu0 %v937
    %960 = vmatprep.subr.bf16.mxu0 0
    %961 = vmatpush1.bf16.msra.mxu0 %v938
    %962 = vmatprep.subr.bf16.mxu0 0
    %963 = vmatpush1.bf16.msra.mxu0 %v939
    %964 = vmatprep.subr.bf16.mxu0 0
    %965 = vmatpush1.bf16.msra.mxu0 0
    %966 = vmatprep.subr.bf16.mxu0 0
    %967 = vmatpush1.bf16.msra.mxu0 0
    %968 = vmatprep.subr.bf16.mxu0 0
    %969 = vmatpush1.bf16.msra.mxu0 0
    %970 = vmatprep.subr.bf16.mxu0 0
    %971 = vmatpush1.bf16.msra.mxu0 0
    %972 = vmatprep.subr.bf16.mxu0 0
    %973 = vmatpush1.bf16.msra.mxu0 0
    %974 = vmatprep.subr.bf16.mxu0 0
    %975 = vmatpush1.bf16.msra.mxu0 0
    %976 = vmatprep.subr.bf16.mxu0 0
    %977 = vmatpush1.bf16.msra.mxu0 0
    %978 = vmatprep.subr.bf16.mxu0 0
    %979 = vmatpush1.bf16.msra.mxu0 0
    %980 = vmatprep.mubr.bf16.mxu0 0
    %981 = vmatmul.mubr.bf16.gmra.mrb[0].mxu0 %v896
    %v982 = vpop.f32.mrb[0].mxu0
    %v983 = vadd.f32 0.0, %v982
    %v984 = vpop.f32.mrb[0].mxu0
    %v985 = vpop.f32.mrb[0].mxu0
    %v986 = vadd.f32 0.0, %v985
    %v987 = vpop.f32.mrb[0].mxu0
    %988 = vmatprep.mubr.bf16.mxu0 0
    %989 = vmatmul.mubr.bf16.gmra.mrb[0].mxu0 %v897
    %v990 = vpop.f32.mrb[0].mxu0
    %v991 = vadd.f32 0.0, %v990
    %v992 = vpop.f32.mrb[0].mxu0
    %v993 = vpop.f32.mrb[0].mxu0
    %v994 = vadd.f32 0.0, %v993
    %v995 = vpop.f32.mrb[0].mxu0
    %996 = vdwg.mxu0
    %v997 = vadd.f32 %v832, %v983
    %v998 = vadd.f32 %v835, %v986
    %v999 = vadd.f32 %v840, %v991
    %v1000 = vadd.f32 %v843, %v994
    %v1001 = vld [vmem:[%s5] sm:$0x1]
    %v1002 = vlaneseq
    %v1003 = vshrl.u32 %v1002, 7
    %v1004 = vsub.s32 0, %v1003
    %v1005 = vrot.slane %v1001, %v1004
    %v1006 = vadd.f32 %v997, %v1005
    %v1007 = vadd.f32 %v998, %v1005
    %v1008 = vadd.f32 %v999, %v1005
    %v1009 = vadd.f32 %v1000, %v1005
    %v1010 = vxor.u32 %v1006, 2147483648
    %v1011 = vxor.u32 %v1007, 2147483648
    %v1012 = vxor.u32 %v1008, 2147483648
    %v1013 = vxor.u32 %v1009, 2147483648
    %v1014 = vmul.f32 %v1010, 1.442695
    %v1015 = vpow.pop %v1014
    %v1016 = vmul.f32 %v1011, 1.442695
    %v1017 = vpow.pop %v1016
    %v1018 = vmul.f32 %v1012, 1.442695
    %v1019 = vpow.pop %v1018
    %v1020 = vmul.f32 %v1013, 1.442695
    %v1021 = vpow.pop %v1020
    %v1022 = vadd.f32 %v1015, 1.0
    %v1023 = vadd.f32 %v1017, 1.0
    %v1024 = vadd.f32 %v1019, 1.0
    %v1025 = vadd.f32 %v1021, 1.0
    %v1026 = vrcp.pop %v1022
    %v1027 = vmul.f32 1.0, %v1026
    %v1028 = vrcp.pop %v1023
    %v1029 = vmul.f32 1.0, %v1028
    %v1030 = vrcp.pop %v1024
    %v1031 = vmul.f32 1.0, %v1030
    %v1032 = vrcp.pop %v1025
    %v1033 = vmul.f32 1.0, %v1032
    %v1034 = vmul.f32 %v1006, %v1027
    %v1035 = vmul.f32 %v1007, %v1029
    %v1036 = vmul.f32 %v1008, %v1031
    %v1037 = vmul.f32 %v1009, %v1033
    %v1038 = vld [vmem:[%s5 + $0x1] sm:$0x1]
    %v1039 = vld [vmem:[%s5 + $0x2] sm:$0x1]
    %v1040 = vadd.f32 %v1034, %v1035
    %v1041 = vrot.slane %v1040, 4
    %v1042 = vadd.f32 %v1040, %v1041
    %v1043 = vrot.slane %v1042, 2
    %v1044 = vadd.f32 %v1042, %v1043
    %v1045 = vrot.slane %v1044, 1
    %v1046 = vadd.f32 %v1044, %v1045
    %v1047 = vadd.f32 %v1036, %v1037
    %v1048 = vrot.slane %v1047, 4
    %v1049 = vadd.f32 %v1047, %v1048
    %v1050 = vrot.slane %v1049, 2
    %v1051 = vadd.f32 %v1049, %v1050
    %v1052 = vrot.slane %v1051, 1
    %v1053 = vadd.f32 %v1051, %v1052
    %v1054 = vmul.f32 %v1034, %v1034
    %v1055 = vmul.f32 %v1035, %v1035
    %v1056 = vmul.f32 %v1036, %v1036
    %v1057 = vmul.f32 %v1037, %v1037
    %v1058 = vadd.f32 %v1054, %v1055
    %v1059 = vrot.slane %v1058, 4
    %v1060 = vadd.f32 %v1058, %v1059
    %v1061 = vrot.slane %v1060, 2
    %v1062 = vadd.f32 %v1060, %v1061
    %v1063 = vrot.slane %v1062, 1
    %v1064 = vadd.f32 %v1062, %v1063
    %v1065 = vadd.f32 %v1056, %v1057
    %v1066 = vrot.slane %v1065, 4
    %v1067 = vadd.f32 %v1065, %v1066
    %v1068 = vrot.slane %v1067, 2
    %v1069 = vadd.f32 %v1067, %v1068
    %v1070 = vrot.slane %v1069, 1
    %v1071 = vadd.f32 %v1069, %v1070
    %v1074 = vsel %vm323, %v1053, %v1046
    %v1078 = vsel %vm328, %v1071, %v1064
    %v1080 = vsel %vm331, %v1074, %v1078
    %v1081 = vld [vmem:[#allocation8] sm:$0xff]
    %v1082 = vld [vmem:[#allocation8 + $0x8] sm:$0xff]
    %v1083 = vld [vmem:[#allocation8 + $0x10] sm:$0xff]
    %v1084 = vld [vmem:[#allocation8 + $0x18] sm:$0xff]
    %v1085 = vld [vmem:[#allocation8 + $0x20] sm:$0xff]
    %v1086 = vld [vmem:[#allocation8 + $0x28] sm:$0xff]
    %v1087 = vld [vmem:[#allocation8 + $0x30] sm:$0xff]
    %v1088 = vld [vmem:[#allocation8 + $0x38] sm:$0xff]
    %v1089 = vld [vmem:[#allocation8 + $0x40] sm:$0xff]
    %v1090 = vld [vmem:[#allocation8 + $0x48] sm:$0xff]
    %v1091 = vld [vmem:[#allocation8 + $0x50] sm:$0xff]
    %v1092 = vld [vmem:[#allocation8 + $0x58] sm:$0xff]
    %v1093 = vld [vmem:[#allocation8 + $0x60] sm:$0xff]
    %v1094 = vld [vmem:[#allocation8 + $0x68] sm:$0xff]
    %v1095 = vld [vmem:[#allocation8 + $0x70] sm:$0xff]
    %v1096 = vld [vmem:[#allocation8 + $0x78] sm:$0xff]
    %1097 = vmatprep.subr.mxu0 0.0
    %1098 = vmatpush1.msra.mxu0 %v1081
    %1099 = vmatprep.subr.mxu0 0.0
    %1100 = vmatpush1.msra.mxu0 %v1082
    %1101 = vmatprep.subr.mxu0 0.0
    %1102 = vmatpush1.msra.mxu0 %v1083
    %1103 = vmatprep.subr.mxu0 0.0
    %1104 = vmatpush1.msra.mxu0 %v1084
    %1105 = vmatprep.subr.mxu0 0.0
    %1106 = vmatpush1.msra.mxu0 %v1085
    %1107 = vmatprep.subr.mxu0 0.0
    %1108 = vmatpush1.msra.mxu0 %v1086
    %1109 = vmatprep.subr.mxu0 0.0
    %1110 = vmatpush1.msra.mxu0 %v1087
    %1111 = vmatprep.subr.mxu0 0.0
    %1112 = vmatpush1.msra.mxu0 %v1088
    %1113 = vmatprep.subr.mxu0 0.0
    %1114 = vmatpush1.msra.mxu0 %v1089
    %1115 = vmatprep.subr.mxu0 0.0
    %1116 = vmatpush1.msra.mxu0 %v1090
    %1117 = vmatprep.subr.mxu0 0.0
    %1118 = vmatpush1.msra.mxu0 %v1091
    %1119 = vmatprep.subr.mxu0 0.0
    %1120 = vmatpush1.msra.mxu0 %v1092
    %1121 = vmatprep.subr.mxu0 0.0
    %1122 = vmatpush1.msra.mxu0 %v1093
    %1123 = vmatprep.subr.mxu0 0.0
    %1124 = vmatpush1.msra.mxu0 %v1094
    %1125 = vmatprep.subr.mxu0 0.0
    %1126 = vmatpush1.msra.mxu0 %v1095
    %1127 = vmatprep.subr.mxu0 0.0
    %1128 = vmatpush1.msra.mxu0 %v1096
    %1129 = vmatprep.subr.mxu0 0.0
    %1130 = vmatpush1.msra.mxu0 0.0
    %1131 = vmatprep.subr.mxu0 0.0
    %1132 = vmatpush1.msra.mxu0 0.0
    %1133 = vmatprep.subr.mxu0 0.0
    %1134 = vmatpush1.msra.mxu0 0.0
    %1135 = vmatprep.subr.mxu0 0.0
    %1136 = vmatpush1.msra.mxu0 0.0
    %1137 = vmatprep.subr.mxu0 0.0
    %1138 = vmatpush1.msra.mxu0 0.0
    %1139 = vmatprep.subr.mxu0 0.0
    %1140 = vmatpush1.msra.mxu0 0.0
    %1141 = vmatprep.subr.mxu0 0.0
    %1142 = vmatpush1.msra.mxu0 0.0
    %1143 = vmatprep.subr.mxu0 0.0
    %1144 = vmatpush1.msra.mxu0 0.0
    %1145 = vmatprep.subr.mxu0 0.0
    %1146 = vmatpush1.msra.mxu0 0.0
    %1147 = vmatprep.subr.mxu0 0.0
    %1148 = vmatpush1.msra.mxu0 0.0
    %1149 = vmatprep.subr.mxu0 0.0
    %1150 = vmatpush1.msra.mxu0 0.0
    %1151 = vmatprep.subr.mxu0 0.0
    %1152 = vmatpush1.msra.mxu0 0.0
    %1153 = vmatprep.subr.mxu0 0.0
    %1154 = vmatpush1.msra.mxu0 0.0
    %1155 = vmatprep.subr.mxu0 0.0
    %1156 = vmatpush1.msra.mxu0 0.0
    %1157 = vmatprep.subr.mxu0 0.0
    %1158 = vmatpush1.msra.mxu0 0.0
    %1159 = vmatprep.subr.mxu0 0.0
    %1160 = vmatpush1.msra.mxu0 0.0
    %1161 = vmatprep.mubr.f32.mxu0 0.0
    %1162 = vmatmul.mubr.f32.gmra.mrb[0].mxu0 %v1080
    %v1163 = vpop.f32.mrb[0].mxu0
    %v1164 = vadd.f32 0.0, %v1163
    %v1165 = vpop.f32.mrb[0].mxu0
    %1166 = vdwg.mxu0
    %v1167 = vmul.f32 %v1164, %v1164
    %v1169 = vrot.slane %v1167, 6
    %v1171 = vsub.f32 %v1164, %v1169
    %v1172 = vmax.f32 %v1171, 0.0
    %v1173 = vadd.f32 %v1172, 1e-05
    %v1174 = vrsqrt.pop %v1173
    %v1175 = vlaneseq
    %v1176 = vshrl.u32 %v1175, 7
    %v1177 = vsub.s32 0, %v1176
    %v1178 = vrot.slane %v1038, %v1177
    %v1179 = vmul.f32 %v1174, %v1178
    %v1181 = vrot.slane %v1179, 2
    %v1183 = vmul.f32 %v1164, %v1181
    %v1184 = vlaneseq
    %v1185 = vshrl.u32 %v1184, 7
    %v1186 = vsub.s32 0, %v1185
    %v1187 = vrot.slane %v1039, %v1186
    %v1188 = vsub.f32 %v1187, %v1183
    %v1190 = vunpack.c.l.s4 1966171168
    %v1191 = vunpack.c.0.s8 %v1190
    %v1192 = vlaneseq
    %v1193 = vshrl.u32 %v1192, 7
    %v1194 = vsub.s32 %v1191, %v1193
    %v1195 = vrot.slane %v1179, %v1194
    %v1196 = vcombine.high %v1195, %v1195
    %v1198 = vunpack.c.l.s4 1966171168
    %v1199 = vunpack.c.0.s8 %v1198
    %v1200 = vlaneseq
    %v1201 = vshrl.u32 %v1200, 7
    %v1202 = vsub.s32 %v1199, %v1201
    %v1203 = vrot.slane %v1195, %v1202
    %v1205 = vunpack.c.l.s4 1966171168
    %v1206 = vunpack.c.0.s8 %v1205
    %v1207 = vlaneseq
    %v1208 = vshrl.u32 %v1207, 7
    %v1209 = vsub.s32 %v1206, %v1208
    %v1210 = vrot.slane %v1196, %v1209
    %v1211 = vcombine.high %v1203, %v1203
    %v1212 = vcombine.high %v1210, %v1210
    %v1213 = vlaneseq
    %v1214 = vshrl.u32 %v1213, 7
    %v1215 = vsub.s32 0, %v1214
    %v1216 = vrot.slane %v1211, %v1215
    %v1217 = vlaneseq
    %v1218 = vshrl.u32 %v1217, 7
    %v1219 = vsub.s32 0, %v1218
    %v1220 = vrot.slane %v1212, %v1219
    %v1223 = vmul.f32 %v1034, %v1216
    %v1224 = vmul.f32 %v1035, %v1216
    %v1225 = vmul.f32 %v1036, %v1220
    %v1226 = vmul.f32 %v1037, %v1220
    %v1229 = vunpack.c.l.s4 1966171168
    %v1230 = vunpack.c.0.s8 %v1229
    %v1231 = vlaneseq
    %v1232 = vshrl.u32 %v1231, 7
    %v1233 = vsub.s32 %v1230, %v1232
    %v1234 = vrot.slane %v1188, %v1233
    %v1235 = vcombine.high %v1234, %v1234
    %v1237 = vunpack.c.l.s4 1966171168
    %v1238 = vunpack.c.0.s8 %v1237
    %v1239 = vlaneseq
    %v1240 = vshrl.u32 %v1239, 7
    %v1241 = vsub.s32 %v1238, %v1240
    %v1242 = vrot.slane %v1234, %v1241
    %v1244 = vunpack.c.l.s4 1966171168
    %v1245 = vunpack.c.0.s8 %v1244
    %v1246 = vlaneseq
    %v1247 = vshrl.u32 %v1246, 7
    %v1248 = vsub.s32 %v1245, %v1247
    %v1249 = vrot.slane %v1235, %v1248
    %v1250 = vlaneseq
    %v1251 = vshrl.u32 %v1250, 7
    %v1252 = vsub.s32 0, %v1251
    %v1253 = vrot.slane %v1242, %v1252
    %v1254 = vlaneseq
    %v1255 = vshrl.u32 %v1254, 7
    %v1256 = vsub.s32 0, %v1255
    %v1257 = vrot.slane %v1249, %v1256
    %v1260 = vadd.f32 %v1223, %v1253
    %v1261 = vadd.f32 %v1224, %v1253
    %v1262 = vadd.f32 %v1225, %v1257
    %v1263 = vadd.f32 %v1226, %v1257
    %1264 = vst [vmem:[#allocation11] sm:$0xff] %v1260
    %1265 = vst [vmem:[#allocation11 + $0x8] sm:$0xff] %v1261
    %1266 = vst [vmem:[#allocation11 + $0x10] sm:$0xff] %v1262
    %1267 = vst [vmem:[#allocation11 + $0x18] sm:$0xff] %v1263
    // Predicated region
    $region42: #{tpu_custom_call.1} parent=1 // pred_check
      _
    $region43: #{tpu_custom_call.1} parent=1 // pred_check_branch
      %1269 = sbr.rel (0) target = $region45
    $region44: #{tpu_custom_call.1} parent=1 // pred_region
      %s1271 = ssub.s32 512, 512
      %1272 = vsyncadd [#allocation5], %s1271
      %s1273 = sshll.u32 [#allocation11], 4
      %s1274 = int_to_ptr.vmem [resolvable:$true] %s1273
      %1279 = dma.vmem_to_hbm [thread:$0]  %s1274, 512, %s6, [#allocation5], 128, 128, 8
    $region45: #{tpu_custom_call.1} parent=1 // pred_fallthru
      _
    // Predicated region
    $region46: #{tpu_custom_call.1} parent=1 // pred_check
      _
    $region47: #{tpu_custom_call.1} parent=1 // pred_check_branch
      %1281 = sbr.rel (0) target = $region49
    $region48: #{tpu_custom_call.1} parent=1 // pred_region
      %1282 = dma.done [#allocation5], 512
    $region49: #{tpu_custom_call.1} parent=1 // pred_fallthru
      _
    %1283 = vsyncpa [#allocation4], 1
    %1284 = vsyncpa [#allocation7], 1
    %1285 = vsyncpa [#allocation10], 1
    %1286 = vsyncpa [#allocation5], 1

</llo_original>
